<compile_context>
chip_gen: v5e
topology: v5e:2x2
jax: 0.10.0
libtpu: 0.0.40
codegen_flags: <defaults>
</compile_context>

<pallas_src>
import functools
import math

import jax
import jax.numpy as jnp
from jax import lax
from jax.experimental import pallas as pl
from jax.experimental.pallas import tpu as pltpu


# ---------------------------------------------------------------------------
# helpers
# ---------------------------------------------------------------------------

def _round_up(n, m):
    return (n + m - 1) // m * m


def _physical_vmem_bytes():
    try:
        return int(pltpu.get_tpu_info().vmem_capacity_bytes)
    except Exception:
        return 64 << 20  # v7x lower bound; safe everywhere


def _vmem_limit_bytes(streaming_bytes, resident_bytes, scratch_bytes=0):
    """Generous per-call VMEM budget (streamed tiles are double-buffered)."""
    est = 2 * int(streaming_bytes) + int(resident_bytes) + int(scratch_bytes)
    cap = int(0.75 * _physical_vmem_bytes())
    return int(max(32 << 20, min(2 * est, cap)))


def _nbytes(*arrays):
    return int(sum(a.size * a.dtype.itemsize for a in arrays))


def _default_row_tile():
    # 512 on 128-MiB-VMEM chips (v5e/v6e); 256 on v7x (64 MiB).
    return 512 if _physical_vmem_bytes() >= (100 << 20) else 256


def _pick_h_tile(H, cap):
    """Largest multiple-of-128 divisor of H that is <= cap (else H itself)."""
    if H <= cap or H < 128:
        return H
    t = (cap // 128) * 128
    while t >= 128:
        if H % t == 0:
            return t
        t -= 128
    return H


@functools.cache
def _buffered_single_ok():
    """Explicit feature/lowering probe for pl.Buffered(1) (single-buffered
    grid-invariant operands).  A failure here only disables single-buffering;
    it never hides errors from the real kernels and never retraces the block."""
    try:
        const_spec = pl.BlockSpec((8, 128), lambda i: (0, 0),
                                  pipeline_mode=pl.Buffered(1))
    except Exception:
        return False
    try:
        def k(c_ref, x_ref, o_ref):
            o_ref[...] = x_ref[...] + c_ref[...]

        out = pl.pallas_call(
            k,
            out_shape=jax.ShapeDtypeStruct((16, 128), jnp.float32),
            grid=(2,),
            in_specs=[const_spec, pl.BlockSpec((8, 128), lambda i: (i, 0))],
            out_specs=pl.BlockSpec((8, 128), lambda i: (i, 0)),
        )(jnp.zeros((8, 128), jnp.float32), jnp.ones((16, 128), jnp.float32))
        jax.block_until_ready(out)
        return True
    except Exception:
        return False


def _const_spec(shape, single_buffer):
    """BlockSpec for a grid-invariant operand (weights / biases / LN params)."""
    index_map = lambda *_: (0,) * len(shape)
    if single_buffer:
        return pl.BlockSpec(shape, index_map, pipeline_mode=pl.Buffered(1))
    return pl.BlockSpec(shape, index_map)


# ---------------------------------------------------------------------------
# kernels
# ---------------------------------------------------------------------------

def _ln_qkv_kernel(x_ref, g_ref, b_ref, w_ref, bw_ref, q_ref, k_ref, v_ref,
                   *, eps):
    """q/k/v[b, :, tile, :] = split_heads(LayerNorm(x; g, b) @ W_attn + b_attn).

    q is pre-scaled by 1/sqrt(head_dim); the head split happens here (VMEM
    static lane slices) so no XLA transpose is needed between kernels."""
    nh, hd = q_ref.shape[1], q_ref.shape[3]
    C = x_ref.shape[-1]

    x = x_ref[0].astype(jnp.float32)                       # [ts, C]
    mu = jnp.mean(x, axis=-1, keepdims=True)
    var = jnp.mean(jnp.square(x - mu), axis=-1, keepdims=True)
    xn = (x - mu) * lax.rsqrt(var + eps)
    xn = xn * g_ref[...].astype(jnp.float32) + b_ref[...].astype(jnp.float32)

    # MXU consumes the weights' native dtype; accumulate in f32.
    qkv = jnp.dot(xn.astype(w_ref.dtype), w_ref[...],
                  preferred_element_type=jnp.float32)
    qkv = qkv + bw_ref[...].astype(jnp.float32)            # [ts, 3C]

    scale = jnp.float32(1.0 / math.sqrt(hd))
    for h in range(nh):
        q_ref[0, h] = (qkv[:, h * hd:(h + 1) * hd] * scale).astype(q_ref.dtype)
        k_ref[0, h] = qkv[:, C + h * hd:C + (h + 1) * hd].astype(k_ref.dtype)
        v_ref[0, h] = qkv[:, 2 * C + h * hd:2 * C + (h + 1) * hd].astype(v_ref.dtype)


def _flash_attn_kernel(q_ref, k_ref, v_ref, bias_ref, o_ref, m_s, l_s, acc_s):
    """All heads of one batch: online-softmax causal attention over kv tiles."""
    nh, tq, hd = q_ref.shape[1], q_ref.shape[2], q_ref.shape[3]
    tk = k_ref.shape[2]
    qi = pl.program_id(1)
    ki = pl.program_id(2)

    @pl.when(ki == 0)
    def _():
        m_s[...] = jnp.full_like(m_s, -jnp.inf)
        l_s[...] = jnp.zeros_like(l_s)
        acc_s[...] = jnp.zeros_like(acc_s)

    # Skip kv tiles that lie entirely above the causal diagonal.
    @pl.when(ki * tk < (qi + 1) * tq)
    def _():
        q = q_ref[0]                                        # [nh, tq, hd] (pre-scaled)
        k = k_ref[0]                                        # [nh, tk, hd]
        v = v_ref[0]
        s = lax.dot_general(q, k, (((2,), (2,)), ((0,), (0,))),
                            preferred_element_type=jnp.float32)   # [nh, tq, tk]
        # causal mask (torch: masked_fill(causal == 0, finfo.min)); one compare.
        row = qi * tq + lax.broadcasted_iota(jnp.int32, (tq, tk), 0)
        col = ki * tk + lax.broadcasted_iota(jnp.int32, (tq, tk), 1)
        s = jnp.where((col <= row)[None], s, jnp.finfo(jnp.float32).min)
        # key-padding mask as additive 0 / -inf bias (torch masked_fill -inf).
        s = s + bias_ref[0]                                 # [1, tk] broadcast

        m_prev = m_s[...]
        m_new = jnp.maximum(m_prev, jnp.max(s, axis=-1, keepdims=True))
        alpha = jnp.exp(m_prev - m_new)
        p = jnp.exp(s - m_new)                              # unnormalized
        l_s[...] = alpha * l_s[...] + jnp.sum(p, axis=-1, keepdims=True)
        pv = lax.dot_general(p.astype(v.dtype), v, (((2,), (1,)), ((0,), (0,))),
                             preferred_element_type=jnp.float32)  # [nh, tq, hd]
        acc_s[...] = alpha * acc_s[...] + pv
        m_s[...] = m_new

    @pl.when(ki == pl.num_programs(2) - 1)
    def _():
        # Deferred softmax normalization on the accumulator (EUP reciprocal).
        out = acc_s[...] * pl.reciprocal(l_s[...], approx=True)   # [nh, tq, hd]
        # merge heads -> lane-dense [tq, C] output block (matches torch
        # transpose(1, 2).view(B, T, C)).
        for h in range(nh):
            o_ref[0, :, h * hd:(h + 1) * hd] = out[h].astype(o_ref.dtype)


def _proj_mlp_kernel(a_ref, x_ref, wp_ref, bp_ref, g2_ref, b2_ref,
                     wfc_ref, bfc_ref, wp2_ref, bp2_ref, o_ref,
                     y_s, yn_s, acc_s, *, eps):
    """y = x + a @ W_proj + b ; out = y + c_proj(gelu(c_fc(ln_2(y)))).

    Grid axis 1 streams (C, tH)/(tH, C) MLP-weight tiles with an f32
    accumulator so resident VMEM is bounded for any model size."""
    hi = pl.program_id(1)

    @pl.when(hi == 0)
    def _():
        a = a_ref[...]
        xres = x_ref[...].astype(jnp.float32)
        proj = jnp.dot(a.astype(wp_ref.dtype), wp_ref[...],
                       preferred_element_type=jnp.float32)
        y = xres + proj + bp_ref[...].astype(jnp.float32)
        mu = jnp.mean(y, axis=-1, keepdims=True)
        var = jnp.mean(jnp.square(y - mu), axis=-1, keepdims=True)
        yn = (y - mu) * lax.rsqrt(var + eps)
        yn = yn * g2_ref[...].astype(jnp.float32) + b2_ref[...].astype(jnp.float32)
        y_s[...] = y
        yn_s[...] = yn
        acc_s[...] = jnp.zeros_like(acc_s)

    # c_fc tile -> exact erf GELU (nn.GELU() default) -> c_proj tile
    h = jnp.dot(yn_s[...].astype(wfc_ref.dtype), wfc_ref[...],
                preferred_element_type=jnp.float32)
    h = h + bfc_ref[...].astype(jnp.float32)
    h = 0.5 * h * (1.0 + lax.erf(h * jnp.float32(0.7071067811865476)))
    acc_s[...] += jnp.dot(h.astype(wp2_ref.dtype), wp2_ref[...],
                          preferred_element_type=jnp.float32)

    @pl.when(hi == pl.num_programs(1) - 1)
    def _():
        # TODO(synk): nn.Dropout train-mode RNG not implemented; eval-mode identity.
        o = acc_s[...] + bp2_ref[...].astype(jnp.float32)
        o_ref[...] = (y_s[...] + o).astype(o_ref.dtype)


# ---------------------------------------------------------------------------
# forward wrapper
# ---------------------------------------------------------------------------

def _forward(x, params, attention_mask, *, eps, seq_tile, row_tile, h_tile_cap,
             single_buffer):
    B, T, C = x.shape
    nh = int(params["n_head"])
    hd = C // nh
    dtype = x.dtype
    isz = jnp.dtype(dtype).itemsize

    w_attn, b_attn = params["w_attn"], params["b_attn"]
    w_projA, b_projA = params["w_attn_proj"], params["b_attn_proj"]
    w_fc, b_fc = params["w_fc"], params["b_fc"]
    w_proj2, b_proj2 = params["w_mlp_proj"], params["b_mlp_proj"]
    g1, b1 = params["ln1_g"], params["ln1_b"]
    g2, b2 = params["ln2_g"], params["ln2_b"]
    H = w_fc.shape[1]

    # --- sequence tiling / padding -----------------------------------------
    ts = seq_tile if T > seq_tile else _round_up(T, 8)
    Tp = _round_up(T, ts)
    n_t = Tp // ts
    x_p = x if Tp == T else jnp.pad(x, ((0, 0), (0, Tp - T), (0, 0)))

    if attention_mask is None:
        amask = jnp.ones((B, T), jnp.float32)
    else:
        amask = attention_mask.astype(jnp.float32)
    if Tp != T:
        amask = jnp.pad(amask, ((0, 0), (0, Tp - T)))  # padded keys are masked
    kbias = jnp.where(amask > 0, 0.0, -jnp.inf).astype(jnp.float32)
    kbias = kbias.reshape(B, 1, Tp)

    sb = single_buffer
    g1r, b1r = g1.reshape(1, C), b1.reshape(1, C)
    g2r, b2r = g2.reshape(1, C), b2.reshape(1, C)
    b_attn_r = b_attn.reshape(1, 3 * C)
    b_projA_r = b_projA.reshape(1, C)
    b_fc_r = b_fc.reshape(1, H)
    b_proj2_r = b_proj2.reshape(1, C)

    # ---- kernel A: ln_1 + c_attn + head split ------------------------------
    resident_a = (g1r, b1r, w_attn, b_attn_r)
    vmem_a = _vmem_limit_bytes(
        streaming_bytes=4 * ts * C * isz,
        resident_bytes=(1 if sb else 2) * _nbytes(*resident_a),
        scratch_bytes=(ts * 3 * C + 2 * ts * C) * 4)
    cost_a = pl.CostEstimate(
        flops=2 * B * Tp * C * 3 * C,
        transcendentals=B * Tp,
        bytes_accessed=_nbytes(x_p, *resident_a) + 3 * B * Tp * C * isz)
    head_shape = jax.ShapeDtypeStruct((B, nh, Tp, hd), dtype)
    head_out_spec = pl.BlockSpec((1, nh, ts, hd), lambda b, i: (b, 0, i, 0))
    q, k, v = pl.pallas_call(
        functools.partial(_ln_qkv_kernel, eps=eps),
        out_shape=(head_shape, head_shape, head_shape),
        grid=(B, n_t),
        in_specs=[
            pl.BlockSpec((1, ts, C), lambda b, i: (b, i, 0)),
            _const_spec((1, C), sb), _const_spec((1, C), sb),
            _const_spec((C, 3 * C), sb), _const_spec((1, 3 * C), sb),
        ],
        out_specs=(head_out_spec, head_out_spec, head_out_spec),
        compiler_params=pltpu.CompilerParams(
            dimension_semantics=("parallel", "parallel"),
            vmem_limit_bytes=vmem_a),
        cost_estimate=cost_a,
    )(x_p, g1r, b1r, w_attn, b_attn_r)

    # ---- kernel B: flash-style causal attention ----------------------------
    vmem_b = _vmem_limit_bytes(
        streaming_bytes=(3 * nh * ts * hd + 2 * ts * C) * isz + ts * 4,
        resident_bytes=0,
        scratch_bytes=(nh * ts * (hd + 2) + 2 * nh * ts * ts) * 4)
    cost_b = pl.CostEstimate(
        flops=2 * B * nh * Tp * Tp * hd,            # causal ~half of 4*B*nh*T^2*hd
        transcendentals=B * nh * Tp * Tp // 2,
        bytes_accessed=_nbytes(q, k, v, kbias) + B * Tp * C * isz)
    qspec = pl.BlockSpec((1, nh, ts, hd), lambda b, qi, ki: (b, 0, qi, 0))
    kvspec = pl.BlockSpec((1, nh, ts, hd), lambda b, qi, ki: (b, 0, ki, 0))
    attn = pl.pallas_call(
        _flash_attn_kernel,
        out_shape=jax.ShapeDtypeStruct((B, Tp, C), dtype),
        grid=(B, n_t, n_t),
        in_specs=[qspec, kvspec, kvspec,
                  pl.BlockSpec((1, 1, ts), lambda b, qi, ki: (b, 0, ki))],
        out_specs=pl.BlockSpec((1, ts, C), lambda b, qi, ki: (b, qi, 0)),
        scratch_shapes=[pltpu.VMEM((nh, ts, 1), jnp.float32),
                        pltpu.VMEM((nh, ts, 1), jnp.float32),
                        pltpu.VMEM((nh, ts, hd), jnp.float32)],
        compiler_params=pltpu.CompilerParams(
            dimension_semantics=("parallel", "parallel", "arbitrary"),
            vmem_limit_bytes=vmem_b),
        cost_estimate=cost_b,
    )(q, k, v, kbias)

    # ---- kernel C: attn c_proj + residual + ln_2 + MLP (H-tiled) + residual -
    Mp = B * Tp
    a2 = attn.reshape(Mp, C)     # leading-dim merge: free reshape, no HBM copy
    x2 = x_p.reshape(Mp, C)
    tm = min(row_tile, _round_up(Mp, 8))
    Mpad = _round_up(Mp, tm)
    if Mpad != Mp:
        a2 = jnp.pad(a2, ((0, Mpad - Mp), (0, 0)))
        x2 = jnp.pad(x2, ((0, Mpad - Mp), (0, 0)))
    tH = _pick_h_tile(H, h_tile_cap)
    n_h = H // tH

    resident_c = (w_projA, b_projA_r, g2r, b2r, b_proj2_r)
    vmem_c = _vmem_limit_bytes(
        streaming_bytes=(3 * tm * C + 2 * C * tH) * isz,
        resident_bytes=(1 if sb else 2) * _nbytes(*resident_c),
        scratch_bytes=(3 * tm * C + tm * tH) * 4)
    cost_c = pl.CostEstimate(
        flops=2 * Mpad * C * C + 4 * Mpad * C * H,
        transcendentals=Mpad * H,
        bytes_accessed=_nbytes(a2, x2, w_projA, w_fc, w_proj2) + Mpad * C * isz)
    out = pl.pallas_call(
        functools.partial(_proj_mlp_kernel, eps=eps),
        out_shape=jax.ShapeDtypeStruct((Mpad, C), dtype),
        grid=(Mpad // tm, n_h),
        in_specs=[
            pl.BlockSpec((tm, C), lambda i, hi: (i, 0)),
            pl.BlockSpec((tm, C), lambda i, hi: (i, 0)),
            _const_spec((C, C), sb), _const_spec((1, C), sb),
            _const_spec((1, C), sb), _const_spec((1, C), sb),
            pl.BlockSpec((C, tH), lambda i, hi: (0, hi)),
            pl.BlockSpec((1, tH), lambda i, hi: (0, hi)),
            pl.BlockSpec((tH, C), lambda i, hi: (hi, 0)),
            _const_spec((1, C), sb),
        ],
        out_specs=pl.BlockSpec((tm, C), lambda i, hi: (i, 0)),
        scratch_shapes=[pltpu.VMEM((tm, C), jnp.float32),
                        pltpu.VMEM((tm, C), jnp.float32),
                        pltpu.VMEM((tm, C), jnp.float32)],
        compiler_params=pltpu.CompilerParams(
            dimension_semantics=("parallel", "arbitrary"),
            vmem_limit_bytes=vmem_c),
        cost_estimate=cost_c,
    )(a2, x2, w_projA, b_projA_r, g2r, b2r, w_fc, b_fc_r, w_proj2, b_proj2_r)

    out = out[:Mp].reshape(B, Tp, C)
    if Tp != T:
        out = out[:, :T]
    return out


def gpt2_block_forward(x, params, attention_mask=None, *, eps=1e-5,
                       seq_tile=256, row_tile=None, h_tile=512,
                       weights_dtype=None):
    """Full GPT2Block forward.  x: [B, T, C].  Returns (hidden_states, None).

    * seq_tile: q/kv tile of the attention kernel (256 default; full T if
      T <= 256).
    * row_tile: row tile over B*T for the projection/MLP kernel; defaults to
      512 on 128-MiB-VMEM chips (v5e/v6e) and 256 on v7x.
    * weights_dtype: optionally cast the four weight matrices (e.g. to
      jnp.bfloat16) for MXU-native throughput and half the resident VMEM /
      HBM traffic; matmuls accumulate in f32 regardless.
    """
    if row_tile is None:
        row_tile = _default_row_tile()
    if weights_dtype is not None:
        params = dict(params)
        for name in ("w_attn", "w_attn_proj", "w_fc", "w_mlp_proj"):
            params[name] = params[name].astype(weights_dtype)
    out = _forward(x, params, attention_mask, eps=eps, seq_tile=seq_tile,
                   row_tile=row_tile, h_tile_cap=h_tile,
                   single_buffer=_buffered_single_ok())
    return out, None


# ---------------------------------------------------------------------------
# pure-JAX reference (mirrors the PyTorch module)
# ---------------------------------------------------------------------------

def reference_gpt2_block(x, attention_mask, params, eps=1e-5):
    B, T, C = x.shape
    nh = int(params["n_head"])
    hd = C // nh

    def ln(v, g, b):
        mu = v.mean(-1, keepdims=True)
        var = ((v - mu) ** 2).mean(-1, keepdims=True)
        return (v - mu) / jnp.sqrt(var + eps) * g + b

    xn = ln(x, params["ln1_g"], params["ln1_b"])
    qkv = xn @ params["w_attn"] + params["b_attn"]
    q, k, v = jnp.split(qkv, 3, axis=-1)
    q = q.reshape(B, T, nh, hd).transpose(0, 2, 1, 3)
    k = k.reshape(B, T, nh, hd).transpose(0, 2, 1, 3)
    v = v.reshape(B, T, nh, hd).transpose(0, 2, 1, 3)
    w = jnp.einsum("bhqd,bhkd->bhqk", q, k) / (hd ** 0.5)
    causal = jnp.tril(jnp.ones((T, T), dtype=jnp.float32))[None, None]
    w = jnp.where(causal == 0, jnp.finfo(w.dtype).min, w)
    am = attention_mask[:, None, None, :]
    w = jnp.where(am == 0, -jnp.inf, w)
    p = jax.nn.softmax(w, axis=-1)
    ao = jnp.einsum("bhqk,bhkd->bhqd", p, v)
    ao = ao.transpose(0, 2, 1, 3).reshape(B, T, C)
    y = x + (ao @ params["w_attn_proj"] + params["b_attn_proj"])
    yn = ln(y, params["ln2_g"], params["ln2_b"])
    h = yn @ params["w_fc"] + params["b_fc"]
    h = 0.5 * h * (1.0 + jax.lax.erf(h * 0.7071067811865476))
    return y + (h @ params["w_mlp_proj"] + params["b_mlp_proj"])


# ---------------------------------------------------------------------------
# demo / self-test
# ---------------------------------------------------------------------------

if __name__ == "__main__":
    # Small deterministic stand-in for GPT-2 (n_embd=64, n_head=4 vs 768/12).
    B, T, C = 2, 8, 64
    n_head = 4
    H = 4 * C
    eps = 1e-5

    key = jax.random.PRNGKey(0)
    ks = jax.random.split(key, 12)

    x = jax.random.normal(ks[0], (B, T, C), dtype=jnp.float32)
    # Tokenizer-style mask with no padding (all ones).
    attention_mask = jnp.ones((B, T), dtype=jnp.float32)

    def w(kk, shape, s=0.02):
        return s * jax.random.normal(kk, shape, dtype=jnp.float32)

    params = {
        "n_head": n_head,
        "ln1_g": 1.0 + 0.1 * jax.random.normal(ks[1], (C,), dtype=jnp.float32),
        "ln1_b": 0.1 * jax.random.normal(ks[2], (C,), dtype=jnp.float32),
        "w_attn": w(ks[3], (C, 3 * C)),
        "b_attn": 0.01 * jax.random.normal(ks[4], (3 * C,), dtype=jnp.float32),
        "w_attn_proj": w(ks[5], (C, C)),
        "b_attn_proj": 0.01 * jax.random.normal(ks[6], (C,), dtype=jnp.float32),
        "ln2_g": 1.0 + 0.1 * jax.random.normal(ks[7], (C,), dtype=jnp.float32),
        "ln2_b": 0.1 * jax.random.normal(ks[8], (C,), dtype=jnp.float32),
        "w_fc": w(ks[9], (C, H)),
        "b_fc": 0.01 * jax.random.normal(ks[10], (H,), dtype=jnp.float32),
        "w_mlp_proj": w(ks[11], (H, C)),
        "b_mlp_proj": jnp.zeros((C,), dtype=jnp.float32),
    }

    out, _ = gpt2_block_forward(x, params, attention_mask, eps=eps)
    out = jax.block_until_ready(out)

    ref = reference_gpt2_block(x, attention_mask, params, eps=eps)
    assert out.shape == (B, T, C)
    max_err = float(jnp.max(jnp.abs(out - ref)))
    # slightly looser than exact f32 because of the approx EUP reciprocal in
    # the deferred softmax normalization.
    assert jnp.allclose(out, ref, atol=2e-3, rtol=2e-3), max_err

    print("KERNEL_OK")
</pallas_src>

<mosaic_0001>
module attributes {stable_mosaic.version = 11 : i64} {
  func.func @k(%arg0: i32, %arg1: memref<8x128xf32, #tpu.memory_space<vmem>>, %arg2: memref<8x128xf32, #tpu.memory_space<vmem>>, %arg3: memref<8x128xf32, #tpu.memory_space<vmem>>) attributes {dimension_semantics = [#tpu.dimension_semantics<arbitrary>], iteration_bounds = array<i64: 2>, scalar_prefetch = 0 : i64, scratch_operands = 0 : i64, tpu.core_type = #tpu.core_type<tc>, window_params = [{pipeline_mode = #tpu.pipeline_mode<synchronous>, transform_indices = @transform_0, window_bounds = array<i64: 8, 128>}, {transform_indices = @transform_1, window_bounds = array<i64: 8, 128>}, {transform_indices = @transform_2, window_bounds = array<i64: 8, 128>}]} {
    %c0 = arith.constant 0 : index
    %c0_0 = arith.constant 0 : index
    %0 = vector.load %arg2[%c0, %c0_0] : memref<8x128xf32, #tpu.memory_space<vmem>>, vector<8x128xf32>
    %c0_1 = arith.constant 0 : index
    %c0_2 = arith.constant 0 : index
    %1 = vector.load %arg1[%c0_1, %c0_2] : memref<8x128xf32, #tpu.memory_space<vmem>>, vector<8x128xf32>
    %2 = arith.addf %0, %1 : vector<8x128xf32>
    %c0_3 = arith.constant 0 : index
    %c0_4 = arith.constant 0 : index
    %3 = vector.load %arg3[%c0_3, %c0_4] : memref<8x128xf32, #tpu.memory_space<vmem>>, vector<8x128xf32>
    tpu.vector_store %arg3[%c0_3, %c0_4], %2 {strides = array<i32>} : memref<8x128xf32, #tpu.memory_space<vmem>>, vector<8x128xf32>,
    return
  }
  func.func @transform_0(%arg0: i32) -> (i32, i32) {
    %c0_i32 = arith.constant 0 : i32
    %c0_i32_0 = arith.constant 0 : i32
    %c0_i32_1 = arith.constant 0 : i32
    return %c0_i32, %c0_i32_0 : i32, i32
  }
  func.func @transform_1(%arg0: i32) -> (i32, i32) {
    %c0_i32 = arith.constant 0 : i32
    %c0_i32_0 = arith.constant 0 : i32
    return %arg0, %c0_i32 : i32, i32
  }
  func.func @transform_2(%arg0: i32) -> (i32, i32) {
    %c0_i32 = arith.constant 0 : i32
    %c0_i32_0 = arith.constant 0 : i32
    return %arg0, %c0_i32 : i32, i32
  }
}

module attributes {stable_mosaic.version = 11 : i64} {
  func.func @_ln_qkv_kernel(%arg0: i32, %arg1: i32, %arg2: memref<1x8x64xf32, #tpu.memory_space<vmem>>, %arg3: memref<1x64xf32, #tpu.memory_space<vmem>>, %arg4: memref<1x64xf32, #tpu.memory_space<vmem>>, %arg5: memref<64x192xf32, #tpu.memory_space<vmem>>, %arg6: memref<1x192xf32, #tpu.memory_space<vmem>>, %arg7: memref<1x4x8x16xf32, #tpu.memory_space<vmem>>, %arg8: memref<1x4x8x16xf32, #tpu.memory_space<vmem>>, %arg9: memref<1x4x8x16xf32, #tpu.memory_space<vmem>>) attributes {dimension_semantics = [#tpu.dimension_semantics<parallel>, #tpu.dimension_semantics<parallel>], iteration_bounds = array<i64: 2, 1>, scalar_prefetch = 0 : i64, scratch_operands = 0 : i64, tpu.core_type = #tpu.core_type<tc>, window_params = [{transform_indices = @transform_0, window_bounds = array<i64: 1, 8, 64>}, {pipeline_mode = #tpu.pipeline_mode<synchronous>, transform_indices = @transform_1, window_bounds = array<i64: 1, 64>}, {pipeline_mode = #tpu.pipeline_mode<synchronous>, transform_indices = @transform_2, window_bounds = array<i64: 1, 64>}, {pipeline_mode = #tpu.pipeline_mode<synchronous>, transform_indices = @transform_3, window_bounds = array<i64: 64, 192>}, {pipeline_mode = #tpu.pipeline_mode<synchronous>, transform_indices = @transform_4, window_bounds = array<i64: 1, 192>}, {transform_indices = @transform_5, window_bounds = array<i64: 1, 4, 8, 16>}, {transform_indices = @transform_6, window_bounds = array<i64: 1, 4, 8, 16>}, {transform_indices = @transform_7, window_bounds = array<i64: 1, 4, 8, 16>}]} {
    %c0 = arith.constant 0 : index
    %c0_0 = arith.constant 0 : index
    %c0_1 = arith.constant 0 : index
    %0 = vector.load %arg2[%c0, %c0_0, %c0_1] : memref<1x8x64xf32, #tpu.memory_space<vmem>>, vector<1x8x64xf32>
    %1 = vector.shape_cast %0 : vector<1x8x64xf32> to vector<8x64xf32>
    %cst = arith.constant dense<0.000000e+00> : vector<8xf32>
    %2 = vector.multi_reduction <add>, %1, %cst [1] : vector<8x64xf32> to vector<8xf32>
    %3 = vector.shape_cast %2 : vector<8xf32> to vector<8x1xf32>
    %cst_2 = arith.constant 6.400000e+01 : f32
    %4 = vector.broadcast %cst_2 : f32 to vector<8x1xf32>
    %5 = arith.divf %3, %4 : vector<8x1xf32>
    %6 = vector.broadcast %5 : vector<8x1xf32> to vector<8x64xf32>
    %7 = arith.subf %1, %6 : vector<8x64xf32>
    %8 = arith.mulf %7, %7 : vector<8x64xf32>
    %cst_3 = arith.constant dense<0.000000e+00> : vector<8xf32>
    %9 = vector.multi_reduction <add>, %8, %cst_3 [1] : vector<8x64xf32> to vector<8xf32>
    %10 = vector.shape_cast %9 : vector<8xf32> to vector<8x1xf32>
    %cst_4 = arith.constant 6.400000e+01 : f32
    %11 = vector.broadcast %cst_4 : f32 to vector<8x1xf32>
    %12 = arith.divf %10, %11 : vector<8x1xf32>
    %13 = vector.broadcast %5 : vector<8x1xf32> to vector<8x64xf32>
    %14 = arith.subf %1, %13 : vector<8x64xf32>
    %cst_5 = arith.constant 9.99999974E-6 : f32
    %15 = vector.broadcast %cst_5 : f32 to vector<8x1xf32>
    %16 = arith.addf %12, %15 : vector<8x1xf32>
    %17 = math.rsqrt %16 : vector<8x1xf32>
    %18 = vector.broadcast %17 : vector<8x1xf32> to vector<8x64xf32>
    %19 = arith.mulf %14, %18 : vector<8x64xf32>
    %c0_6 = arith.constant 0 : index
    %c0_7 = arith.constant 0 : index
    %20 = vector.load %arg3[%c0_6, %c0_7] : memref<1x64xf32, #tpu.memory_space<vmem>>, vector<1x64xf32>
    %21 = vector.broadcast %20 : vector<1x64xf32> to vector<8x64xf32>
    %22 = arith.mulf %19, %21 : vector<8x64xf32>
    %c0_8 = arith.constant 0 : index
    %c0_9 = arith.constant 0 : index
    %23 = vector.load %arg4[%c0_8, %c0_9] : memref<1x64xf32, #tpu.memory_space<vmem>>, vector<1x64xf32>
    %24 = vector.broadcast %23 : vector<1x64xf32> to vector<8x64xf32>
    %25 = arith.addf %22, %24 : vector<8x64xf32>
    %c0_10 = arith.constant 0 : index
    %c0_11 = arith.constant 0 : index
    %26 = vector.load %arg5[%c0_10, %c0_11] : memref<64x192xf32, #tpu.memory_space<vmem>>, vector<64x192xf32>
    %cst_12 = arith.constant dense<0.000000e+00> : vector<8x192xf32>
    %27 = tpu.matmul %25, %26, %cst_12 {dimension_numbers = #tpu.dot_dimension_numbers<[1], [0], [0], [1], [0, 0, 1, 1], [], []>} : vector<8x64xf32>, vector<64x192xf32>, vector<8x192xf32> -> vector<8x192xf32>
    %c0_13 = arith.constant 0 : index
    %c0_14 = arith.constant 0 : index
    %28 = vector.load %arg6[%c0_13, %c0_14] : memref<1x192xf32, #tpu.memory_space<vmem>>, vector<1x192xf32>
    %29 = vector.broadcast %28 : vector<1x192xf32> to vector<8x192xf32>
    %30 = arith.addf %27, %29 : vector<8x192xf32>
    %31 = vector.extract_strided_slice %30 {offsets = [0, 0], sizes = [8, 16], strides = [1, 1]} : vector<8x192xf32> to vector<8x16xf32>
    %cst_15 = arith.constant 2.500000e-01 : f32
    %32 = vector.broadcast %cst_15 : f32 to vector<8x16xf32>
    %33 = arith.mulf %31, %32 : vector<8x16xf32>
    %c0_16 = arith.constant 0 : index
    %c0_17 = arith.constant 0 : index
    %c0_18 = arith.constant 0 : index
    %c0_19 = arith.constant 0 : index
    %34 = vector.load %arg7[%c0_16, %c0_17, %c0_18, %c0_19] : memref<1x4x8x16xf32, #tpu.memory_space<vmem>>, vector<1x1x8x16xf32>
    %35 = vector.shape_cast %34 : vector<1x1x8x16xf32> to vector<8x16xf32>
    %36 = vector.shape_cast %33 : vector<8x16xf32> to vector<1x1x8x16xf32>
    tpu.vector_store %arg7[%c0_16, %c0_17, %c0_18, %c0_19], %36 {strides = array<i32>} : memref<1x4x8x16xf32, #tpu.memory_space<vmem>>, vector<1x1x8x16xf32>,
    %37 = vector.extract_strided_slice %30 {offsets = [0, 64], sizes = [8, 16], strides = [1, 1]} : vector<8x192xf32> to vector<8x16xf32>
    %c0_20 = arith.constant 0 : index
    %c0_21 = arith.constant 0 : index
    %c0_22 = arith.constant 0 : index
    %c0_23 = arith.constant 0 : index
    %38 = vector.load %arg8[%c0_20, %c0_21, %c0_22, %c0_23] : memref<1x4x8x16xf32, #tpu.memory_space<vmem>>, vector<1x1x8x16xf32>
    %39 = vector.shape_cast %38 : vector<1x1x8x16xf32> to vector<8x16xf32>
    %40 = vector.shape_cast %37 : vector<8x16xf32> to vector<1x1x8x16xf32>
    tpu.vector_store %arg8[%c0_20, %c0_21, %c0_22, %c0_23], %40 {strides = array<i32>} : memref<1x4x8x16xf32, #tpu.memory_space<vmem>>, vector<1x1x8x16xf32>,
    %41 = vector.extract_strided_slice %30 {offsets = [0, 128], sizes = [8, 16], strides = [1, 1]} : vector<8x192xf32> to vector<8x16xf32>
    %c0_24 = arith.constant 0 : index
    %c0_25 = arith.constant 0 : index
    %c0_26 = arith.constant 0 : index
    %c0_27 = arith.constant 0 : index
    %42 = vector.load %arg9[%c0_24, %c0_25, %c0_26, %c0_27] : memref<1x4x8x16xf32, #tpu.memory_space<vmem>>, vector<1x1x8x16xf32>
    %43 = vector.shape_cast %42 : vector<1x1x8x16xf32> to vector<8x16xf32>
    %44 = vector.shape_cast %41 : vector<8x16xf32> to vector<1x1x8x16xf32>
    tpu.vector_store %arg9[%c0_24, %c0_25, %c0_26, %c0_27], %44 {strides = array<i32>} : memref<1x4x8x16xf32, #tpu.memory_space<vmem>>, vector<1x1x8x16xf32>,
    %45 = vector.extract_strided_slice %30 {offsets = [0, 16], sizes = [8, 16], strides = [1, 1]} : vector<8x192xf32> to vector<8x16xf32>
    %cst_28 = arith.constant 2.500000e-01 : f32
    %46 = vector.broadcast %cst_28 : f32 to vector<8x16xf32>
    %47 = arith.mulf %45, %46 : vector<8x16xf32>
    %c0_29 = arith.constant 0 : index
    %c1 = arith.constant 1 : index
    %c0_30 = arith.constant 0 : index
    %c0_31 = arith.constant 0 : index
    %48 = vector.load %arg7[%c0_29, %c1, %c0_30, %c0_31] : memref<1x4x8x16xf32, #tpu.memory_space<vmem>>, vector<1x1x8x16xf32>
    %49 = vector.shape_cast %48 : vector<1x1x8x16xf32> to vector<8x16xf32>
    %50 = vector.shape_cast %47 : vector<8x16xf32> to vector<1x1x8x16xf32>
    tpu.vector_store %arg7[%c0_29, %c1, %c0_30, %c0_31], %50 {strides = array<i32>} : memref<1x4x8x16xf32, #tpu.memory_space<vmem>>, vector<1x1x8x16xf32>,
    %51 = vector.extract_strided_slice %30 {offsets = [0, 80], sizes = [8, 16], strides = [1, 1]} : vector<8x192xf32> to vector<8x16xf32>
    %c0_32 = arith.constant 0 : index
    %c1_33 = arith.constant 1 : index
    %c0_34 = arith.constant 0 : index
    %c0_35 = arith.constant 0 : index
    %52 = vector.load %arg8[%c0_32, %c1_33, %c0_34, %c0_35] : memref<1x4x8x16xf32, #tpu.memory_space<vmem>>, vector<1x1x8x16xf32>
    %53 = vector.shape_cast %52 : vector<1x1x8x16xf32> to vector<8x16xf32>
    %54 = vector.shape_cast %51 : vector<8x16xf32> to vector<1x1x8x16xf32>
    tpu.vector_store %arg8[%c0_32, %c1_33, %c0_34, %c0_35], %54 {strides = array<i32>} : memref<1x4x8x16xf32, #tpu.memory_space<vmem>>, vector<1x1x8x16xf32>,
    %55 = vector.extract_strided_slice %30 {offsets = [0, 144], sizes = [8, 16], strides = [1, 1]} : vector<8x192xf32> to vector<8x16xf32>
    %c0_36 = arith.constant 0 : index
    %c1_37 = arith.constant 1 : index
    %c0_38 = arith.constant 0 : index
    %c0_39 = arith.constant 0 : index
    %56 = vector.load %arg9[%c0_36, %c1_37, %c0_38, %c0_39] : memref<1x4x8x16xf32, #tpu.memory_space<vmem>>, vector<1x1x8x16xf32>
    %57 = vector.shape_cast %56 : vector<1x1x8x16xf32> to vector<8x16xf32>
    %58 = vector.shape_cast %55 : vector<8x16xf32> to vector<1x1x8x16xf32>
    tpu.vector_store %arg9[%c0_36, %c1_37, %c0_38, %c0_39], %58 {strides = array<i32>} : memref<1x4x8x16xf32, #tpu.memory_space<vmem>>, vector<1x1x8x16xf32>,
    %59 = vector.extract_strided_slice %30 {offsets = [0, 32], sizes = [8, 16], strides = [1, 1]} : vector<8x192xf32> to vector<8x16xf32>
    %cst_40 = arith.constant 2.500000e-01 : f32
    %60 = vector.broadcast %cst_40 : f32 to vector<8x16xf32>
    %61 = arith.mulf %59, %60 : vector<8x16xf32>
    %c0_41 = arith.constant 0 : index
    %c2 = arith.constant 2 : index
    %c0_42 = arith.constant 0 : index
    %c0_43 = arith.constant 0 : index
    %62 = vector.load %arg7[%c0_41, %c2, %c0_42, %c0_43] : memref<1x4x8x16xf32, #tpu.memory_space<vmem>>, vector<1x1x8x16xf32>
    %63 = vector.shape_cast %62 : vector<1x1x8x16xf32> to vector<8x16xf32>
    %64 = vector.shape_cast %61 : vector<8x16xf32> to vector<1x1x8x16xf32>
    tpu.vector_store %arg7[%c0_41, %c2, %c0_42, %c0_43], %64 {strides = array<i32>} : memref<1x4x8x16xf32, #tpu.memory_space<vmem>>, vector<1x1x8x16xf32>,
    %65 = vector.extract_strided_slice %30 {offsets = [0, 96], sizes = [8, 16], strides = [1, 1]} : vector<8x192xf32> to vector<8x16xf32>
    %c0_44 = arith.constant 0 : index
    %c2_45 = arith.constant 2 : index
    %c0_46 = arith.constant 0 : index
    %c0_47 = arith.constant 0 : index
    %66 = vector.load %arg8[%c0_44, %c2_45, %c0_46, %c0_47] : memref<1x4x8x16xf32, #tpu.memory_space<vmem>>, vector<1x1x8x16xf32>
    %67 = vector.shape_cast %66 : vector<1x1x8x16xf32> to vector<8x16xf32>
    %68 = vector.shape_cast %65 : vector<8x16xf32> to vector<1x1x8x16xf32>
    tpu.vector_store %arg8[%c0_44, %c2_45, %c0_46, %c0_47], %68 {strides = array<i32>} : memref<1x4x8x16xf32, #tpu.memory_space<vmem>>, vector<1x1x8x16xf32>,
    %69 = vector.extract_strided_slice %30 {offsets = [0, 160], sizes = [8, 16], strides = [1, 1]} : vector<8x192xf32> to vector<8x16xf32>
    %c0_48 = arith.constant 0 : index
    %c2_49 = arith.constant 2 : index
    %c0_50 = arith.constant 0 : index
    %c0_51 = arith.constant 0 : index
    %70 = vector.load %arg9[%c0_48, %c2_49, %c0_50, %c0_51] : memref<1x4x8x16xf32, #tpu.memory_space<vmem>>, vector<1x1x8x16xf32>
    %71 = vector.shape_cast %70 : vector<1x1x8x16xf32> to vector<8x16xf32>
    %72 = vector.shape_cast %69 : vector<8x16xf32> to vector<1x1x8x16xf32>
    tpu.vector_store %arg9[%c0_48, %c2_49, %c0_50, %c0_51], %72 {strides = array<i32>} : memref<1x4x8x16xf32, #tpu.memory_space<vmem>>, vector<1x1x8x16xf32>,
    %73 = vector.extract_strided_slice %30 {offsets = [0, 48], sizes = [8, 16], strides = [1, 1]} : vector<8x192xf32> to vector<8x16xf32>
    %cst_52 = arith.constant 2.500000e-01 : f32
    %74 = vector.broadcast %cst_52 : f32 to vector<8x16xf32>
    %75 = arith.mulf %73, %74 : vector<8x16xf32>
    %c0_53 = arith.constant 0 : index
    %c3 = arith.constant 3 : index
    %c0_54 = arith.constant 0 : index
    %c0_55 = arith.constant 0 : index
    %76 = vector.load %arg7[%c0_53, %c3, %c0_54, %c0_55] : memref<1x4x8x16xf32, #tpu.memory_space<vmem>>, vector<1x1x8x16xf32>
    %77 = vector.shape_cast %76 : vector<1x1x8x16xf32> to vector<8x16xf32>
    %78 = vector.shape_cast %75 : vector<8x16xf32> to vector<1x1x8x16xf32>
    tpu.vector_store %arg7[%c0_53, %c3, %c0_54, %c0_55], %78 {strides = array<i32>} : memref<1x4x8x16xf32, #tpu.memory_space<vmem>>, vector<1x1x8x16xf32>,
    %79 = vector.extract_strided_slice %30 {offsets = [0, 112], sizes = [8, 16], strides = [1, 1]} : vector<8x192xf32> to vector<8x16xf32>
    %c0_56 = arith.constant 0 : index
    %c3_57 = arith.constant 3 : index
    %c0_58 = arith.constant 0 : index
    %c0_59 = arith.constant 0 : index
    %80 = vector.load %arg8[%c0_56, %c3_57, %c0_58, %c0_59] : memref<1x4x8x16xf32, #tpu.memory_space<vmem>>, vector<1x1x8x16xf32>
    %81 = vector.shape_cast %80 : vector<1x1x8x16xf32> to vector<8x16xf32>
    %82 = vector.shape_cast %79 : vector<8x16xf32> to vector<1x1x8x16xf32>
    tpu.vector_store %arg8[%c0_56, %c3_57, %c0_58, %c0_59], %82 {strides = array<i32>} : memref<1x4x8x16xf32, #tpu.memory_space<vmem>>, vector<1x1x8x16xf32>,
    %83 = vector.extract_strided_slice %30 {offsets = [0, 176], sizes = [8, 16], strides = [1, 1]} : vector<8x192xf32> to vector<8x16xf32>
    %c0_60 = arith.constant 0 : index
    %c3_61 = arith.constant 3 : index
    %c0_62 = arith.constant 0 : index
    %c0_63 = arith.constant 0 : index
    %84 = vector.load %arg9[%c0_60, %c3_61, %c0_62, %c0_63] : memref<1x4x8x16xf32, #tpu.memory_space<vmem>>, vector<1x1x8x16xf32>
    %85 = vector.shape_cast %84 : vector<1x1x8x16xf32> to vector<8x16xf32>
    %86 = vector.shape_cast %83 : vector<8x16xf32> to vector<1x1x8x16xf32>
    tpu.vector_store %arg9[%c0_60, %c3_61, %c0_62, %c0_63], %86 {strides = array<i32>} : memref<1x4x8x16xf32, #tpu.memory_space<vmem>>, vector<1x1x8x16xf32>,
    return
  }
  func.func @transform_0(%arg0: i32, %arg1: i32) -> (i32, i32, i32) {
    %c0_i32 = arith.constant 0 : i32
    %c0_i32_0 = arith.constant 0 : i32
    return %arg0, %arg1, %c0_i32 : i32, i32, i32
  }
  func.func @transform_1(%arg0: i32, %arg1: i32) -> (i32, i32) {
    %c0_i32 = arith.constant 0 : i32
    %c0_i32_0 = arith.constant 0 : i32
    %c0_i32_1 = arith.constant 0 : i32
    return %c0_i32, %c0_i32_0 : i32, i32
  }
  func.func @transform_2(%arg0: i32, %arg1: i32) -> (i32, i32) {
    %c0_i32 = arith.constant 0 : i32
    %c0_i32_0 = arith.constant 0 : i32
    %c0_i32_1 = arith.constant 0 : i32
    return %c0_i32, %c0_i32_0 : i32, i32
  }
  func.func @transform_3(%arg0: i32, %arg1: i32) -> (i32, i32) {
    %c0_i32 = arith.constant 0 : i32
    %c0_i32_0 = arith.constant 0 : i32
    %c0_i32_1 = arith.constant 0 : i32
    return %c0_i32, %c0_i32_0 : i32, i32
  }
  func.func @transform_4(%arg0: i32, %arg1: i32) -> (i32, i32) {
    %c0_i32 = arith.constant 0 : i32
    %c0_i32_0 = arith.constant 0 : i32
    %c0_i32_1 = arith.constant 0 : i32
    return %c0_i32, %c0_i32_0 : i32, i32
  }
  func.func @transform_5(%arg0: i32, %arg1: i32) -> (i32, i32, i32, i32) {
    %c0_i32 = arith.constant 0 : i32
    %c0_i32_0 = arith.constant 0 : i32
    %c0_i32_1 = arith.constant 0 : i32
    return %arg0, %c0_i32, %arg1, %c0_i32_0 : i32, i32, i32, i32
  }
  func.func @transform_6(%arg0: i32, %arg1: i32) -> (i32, i32, i32, i32) {
    %c0_i32 = arith.constant 0 : i32
    %c0_i32_0 = arith.constant 0 : i32
    %c0_i32_1 = arith.constant 0 : i32
    return %arg0, %c0_i32, %arg1, %c0_i32_0 : i32, i32, i32, i32
  }
  func.func @transform_7(%arg0: i32, %arg1: i32) -> (i32, i32, i32, i32) {
    %c0_i32 = arith.constant 0 : i32
    %c0_i32_0 = arith.constant 0 : i32
    %c0_i32_1 = arith.constant 0 : i32
    return %arg0, %c0_i32, %arg1, %c0_i32_0 : i32, i32, i32, i32
  }
}

</mosaic_0001>

<llo_original>
// kernel: tpu_custom_call.1
$region0: #{tpu_custom_call.1}
  #allocation0 [shape = 'u32[]', space=smem, size = 0x4, offset = 0x4, fixed_abs, tag = 'smem constant byte address 0x4 - core index']
  #allocation1 [shape = 'u32[72,128]{1,0:T(1,128)}', space=vmem, size = 0x9000, scoped, tag = 'internal scratch']
  %s0 = inlined_call_operand.hbm [shape: f32[8,128], index: 0, kind: input, shape index: {}]
  %s1 = inlined_call_operand.hbm [shape: f32[16,128], index: 1, kind: input, shape index: {}]
  %s2 = inlined_call_operand.hbm [shape: f32[16,128], index: 2, kind: output, shape index: {}]
  %s3 = sld [smem:[#allocation0]]
  $region49: #{tpu_custom_call.1} parent=0
    _
  %s5 = ssub.s32 1, %s3
  %s6 = scalar_select 0, %s5, %s3
  $region1: #{tpu_custom_call.1} parent=0
    #allocation2 [shape = 'u8[4096]{0}', space=vmem, size = 0x1000, scoped, tag = 'input window, operand 0, single buffered']
    #allocation3 [shape = 's32[2]{0}', space=sflag, size = 0x8, scoped, tag = 'scoped memory for tpu_custom_call.1']
    #allocation4 [shape = 's32[2]{0}', space=sflag, size = 0x8, scoped, tag = 'scoped memory for tpu_custom_call.1']
    #allocation5 [shape = 'u8[8192]{0}', space=vmem, size = 0x2000, scoped, tag = 'input window, operand 1']
    #allocation6 [shape = 's32[2]{0}', space=sflag, size = 0x8, scoped, tag = 'scoped memory for tpu_custom_call.1']
    #allocation7 [shape = 'u8[8192]{0}', space=vmem, size = 0x2000, scoped, tag = 'output window, operand 0']
    %7 = vsyncpa [#allocation3], 0
    %8 = vsyncpa [#allocation6], 0
    %s9 = scalar_lea.sflag [#allocation6], 1
    %10 = vsyncpa %s9, 0
    %11 = vsyncpa [#allocation4], 0
    %s12 = scalar_lea.sflag [#allocation4], 1
    %13 = vsyncpa %s12, 0
    loop: start=0, step=1, limit=4
    $region2: #{tpu_custom_call.1} parent=1 // loop_pre_header
      _
    $region3: #{tpu_custom_call.1} parent=1 // loop_header
      %s15 = sphi 0, %s19
      %p16 = scmp.ge.s32.totalorder %s15, 4
      %s23 = sphi 0, %s23
      %s25 = sphi 0, %s23
      %s26 = sphi 0, %s25
      %s40 = sphi 0, %s26
      %s46 = sphi 0, %s48
      %s49 = sphi 0, %s46
      %s50 = sphi 0, %s49
      %s66 = sphi 0, %s50
      %s72 = sphi 0, %s74
      %s75 = sphi 0, %s72
      %s76 = sphi 0, %s75
      %s92 = sphi 0, %s76
    $region4: #{tpu_custom_call.1} parent=1 // loop_header_branch
      %18 = sbr.rel (%p16) target = $region8
    $region5: #{tpu_custom_call.1} parent=1 // loop_body
      %s20 = ssub.s32 %s15, 1
      %s21 = ssub.s32 %s15, 2
      %s22 = sadd.s32 %s15, 1
      %s24 = sadd.s32 %s23, 1
      %p27 = scmp.eq.s32.totalorder %s15, 1
      %p28 = scmp.ne.s32.totalorder %s23, %s25
      %p29 = scmp.eq.s32.totalorder %s15, 0
      %p30 = por %p28, %p29
      %p31 = scmp.ne.s32.totalorder %s23, %s25
      %p32 = scmp.eq.s32.totalorder %s20, 1
      %p33 = por %p31, %p32
      %p34 = scmp.ne.s32.totalorder %s25, %s26
      %p35 = scmp.eq.s32.totalorder %s20, 0
      %p36 = por %p34, %p35
      %p37 = scmp.ne.s32.totalorder %s25, %s26
      %p38 = scmp.eq.s32.totalorder %s21, 1
      %p39 = por %p37, %p38
      %p41 = scmp.ne.s32.totalorder %s26, %s40
      %p42 = scmp.eq.s32.totalorder %s21, 0
      %p43 = por %p41, %p42
      %s44 = ssub.s32 %s15, %s22
      %p45 = scmp.eq.s32.totalorder %s44, 0
      %s47 = sadd.s32 %s46, 1
      %s48 = scalar_select %p45, %s46, %s47
      %p51 = pneg %p45
      %p52 = scmp.eq.s32.totalorder %s15, 1
      %p53 = por %p51, %p52
      %p54 = scmp.ne.s32.totalorder %s46, %s49
      %p55 = scmp.eq.s32.totalorder %s15, 0
      %p56 = por %p54, %p55
      %p57 = scmp.ne.s32.totalorder %s46, %s49
      %p58 = scmp.eq.s32.totalorder %s20, 1
      %p59 = por %p57, %p58
      %p60 = scmp.ne.s32.totalorder %s49, %s50
      %p61 = scmp.eq.s32.totalorder %s20, 0
      %p62 = por %p60, %p61
      %p63 = scmp.ne.s32.totalorder %s49, %s50
      %p64 = scmp.eq.s32.totalorder %s21, 1
      %p65 = por %p63, %p64
      %p67 = scmp.ne.s32.totalorder %s50, %s66
      %p68 = scmp.eq.s32.totalorder %s21, 0
      %p69 = por %p67, %p68
      %s70 = ssub.s32 %s15, %s22
      %p71 = scmp.eq.s32.totalorder %s70, 0
      %s73 = sadd.s32 %s72, 1
      %s74 = scalar_select %p71, %s72, %s73
      %p77 = pneg %p71
      %p78 = scmp.eq.s32.totalorder %s15, 1
      %p79 = por %p77, %p78
      %p80 = scmp.ne.s32.totalorder %s72, %s75
      %p81 = scmp.eq.s32.totalorder %s15, 0
      %p82 = por %p80, %p81
      %p83 = scmp.ne.s32.totalorder %s72, %s75
      %p84 = scmp.eq.s32.totalorder %s20, 1
      %p85 = por %p83, %p84
      %p86 = scmp.ne.s32.totalorder %s75, %s76
      %p87 = scmp.eq.s32.totalorder %s20, 0
      %p88 = por %p86, %p87
      %p89 = scmp.ne.s32.totalorder %s75, %s76
      %p90 = scmp.eq.s32.totalorder %s21, 1
      %p91 = por %p89, %p90
      %p93 = scmp.ne.s32.totalorder %s76, %s92
      %p94 = scmp.eq.s32.totalorder %s21, 0
      %p95 = por %p93, %p94
      %p96 = scmp.le.s32.totalorder 1, %s15
      %p97 = scmp.lt.s32.totalorder %s15, 3
      %p98 = pnand %p96, %p97
      %p99 = pneg %p98
      // Predicated region
      $region9: #{tpu_custom_call.1} parent=5 // pred_check
        _
      $region10: #{tpu_custom_call.1} parent=5 // pred_check_branch
        %101 = sbr.rel (%p98) target = $region12
      $region11: #{tpu_custom_call.1} parent=5 // pred_region
        %s102 = ssub.s32 %s15, 1
        // Predicated region
        $region13: #{tpu_custom_call.1} parent=11 // pred_check
          %p103 = pneg %p36
        $region14: #{tpu_custom_call.1} parent=11 // pred_check_branch
          %105 = sbr.rel (%p103) target = $region16
        $region15: #{tpu_custom_call.1} parent=11 // pred_region
          %107 = vsyncadd [#allocation3], 0
          %s109 = sshll.u32 %s0, 4
          %s110 = int_to_ptr.hbm [resolvable:$true] %s109
          %s111 = sshll.u32 [#allocation2], 4
          %s112 = int_to_ptr.vmem [resolvable:$true] %s111
          %114 = dma.hbm_to_vmem [thread:$0]  %s110, 128, %s112, [#allocation3]
        $region16: #{tpu_custom_call.1} parent=11 // pred_fallthru
          _
      $region12: #{tpu_custom_call.1} parent=5 // pred_fallthru
        _
      %p115 = scmp.lt.s32.totalorder %s15, 2
      // Predicated region
      $region17: #{tpu_custom_call.1} parent=5 // pred_check
        %p116 = pneg %p115
      $region18: #{tpu_custom_call.1} parent=5 // pred_check_branch
        %118 = sbr.rel (%p116) target = $region20
      $region19: #{tpu_custom_call.1} parent=5 // pred_region
        // Predicated region
        $region21: #{tpu_custom_call.1} parent=19 // pred_check
          %p119 = pneg %p56
        $region22: #{tpu_custom_call.1} parent=19 // pred_check_branch
          %121 = sbr.rel (%p119) target = $region24
        $region23: #{tpu_custom_call.1} parent=19 // pred_region
          %s122 = sand.u32 %s46, 1
          %s123 = scalar_lea.sflag [#allocation6], %s122
          %s124 = sand.u32 %s46, 1
          %s125 = smul.addr %s124, 8
          %s126 = scalar_lea.vmem [#allocation5], %s125
          %128 = vsyncadd %s123, 0
          %s129 = smul.addr %s15, 8
          %s130 = scalar_lea.hbm %s1, %s129
          %s132 = sshll.u32 %s130, 4
          %s133 = int_to_ptr.hbm [resolvable:$true] %s132
          %s134 = sshll.u32 %s126, 4
          %s135 = int_to_ptr.vmem [resolvable:$true] %s134
          %137 = dma.hbm_to_vmem [thread:$0]  %s133, 128, %s135, %s123
        $region24: #{tpu_custom_call.1} parent=19 // pred_fallthru
          _
      $region20: #{tpu_custom_call.1} parent=5 // pred_fallthru
        _
      %p138 = scmp.le.s32.totalorder 1, %s15
      %p139 = scmp.lt.s32.totalorder %s15, 3
      %p140 = pnand %p138, %p139
      %p141 = pneg %p140
      // Predicated region
      $region25: #{tpu_custom_call.1} parent=5 // pred_check
        _
      $region26: #{tpu_custom_call.1} parent=5 // pred_check_branch
        %143 = sbr.rel (%p140) target = $region28
      $region27: #{tpu_custom_call.1} parent=5 // pred_region
        %s144 = ssub.s32 %s15, 1
        // Predicated region
        $region29: #{tpu_custom_call.1} parent=27 // pred_check
          %p145 = pneg %p36
        $region30: #{tpu_custom_call.1} parent=27 // pred_check_branch
          %147 = sbr.rel (%p145) target = $region32
        $region31: #{tpu_custom_call.1} parent=27 // pred_region
          %149 = dma.done [#allocation3], 128
        $region32: #{tpu_custom_call.1} parent=27 // pred_fallthru
          _
        %s150 = sand.u32 %s49, 1
        %s151 = scalar_lea.sflag [#allocation6], %s150
        %s152 = sand.u32 %s49, 1
        %s153 = smul.addr %s152, 8
        %s154 = scalar_lea.vmem [#allocation5], %s153
        // Predicated region
        $region33: #{tpu_custom_call.1} parent=27 // pred_check
          %p155 = pneg %p62
        $region34: #{tpu_custom_call.1} parent=27 // pred_check_branch
          %157 = sbr.rel (%p155) target = $region36
        $region35: #{tpu_custom_call.1} parent=27 // pred_region
          %159 = dma.done %s151, 128
        $region36: #{tpu_custom_call.1} parent=27 // pred_fallthru
          _
        %p160 = pneg %p36
        %p161 = pneg %p33
        %s162 = sand.u32 %s49, 1
        %s163 = scalar_lea.sflag [#allocation6], %s162
        %s164 = sand.u32 %s49, 1
        %s165 = smul.addr %s164, 8
        %s166 = scalar_lea.vmem [#allocation5], %s165
        %p167 = pneg %p62
        %p168 = pneg %p59
        %p169 = pneg %p88
        %p170 = pneg %p85
        %s171 = sand.u32 %s75, 1
        %s172 = scalar_lea.sflag [#allocation4], %s171
        %s173 = sand.u32 %s75, 1
        %s174 = smul.addr %s173, 8
        %s175 = scalar_lea.vmem [#allocation7], %s174
        %v176 = vld [vmem:[%s154] sm:$0xff]
        %v177 = vld [vmem:[#allocation2] sm:$0xff]
        %v178 = vadd.f32 %v176, %v177
        %179 = vst [vmem:[%s175] sm:$0xff] %v178
        %s180 = sand.u32 %s75, 1
        %s181 = scalar_lea.sflag [#allocation4], %s180
        %s182 = sand.u32 %s75, 1
        %s183 = smul.addr %s182, 8
        %s184 = scalar_lea.vmem [#allocation7], %s183
        // Predicated region
        $region37: #{tpu_custom_call.1} parent=27 // pred_check
          %p185 = pneg %p85
        $region38: #{tpu_custom_call.1} parent=27 // pred_check_branch
          %187 = sbr.rel (%p185) target = $region40
        $region39: #{tpu_custom_call.1} parent=27 // pred_region
          %189 = vsyncadd %s181, 0
          %s190 = smul.addr %s20, 8
          %s191 = scalar_lea.hbm %s2, %s190
          %s193 = sshll.u32 %s184, 4
          %s194 = int_to_ptr.vmem [resolvable:$true] %s193
          %s195 = sshll.u32 %s191, 4
          %s196 = int_to_ptr.hbm [resolvable:$true] %s195
          %198 = dma.vmem_to_hbm [thread:$0]  %s194, 128, %s196, %s181
        $region40: #{tpu_custom_call.1} parent=27 // pred_fallthru
          _
      $region28: #{tpu_custom_call.1} parent=5 // pred_fallthru
        _
      %p199 = scmp.le.s32.totalorder 2, %s15
      // Predicated region
      $region41: #{tpu_custom_call.1} parent=5 // pred_check
        %p200 = pneg %p199
      $region42: #{tpu_custom_call.1} parent=5 // pred_check_branch
        %202 = sbr.rel (%p200) target = $region44
      $region43: #{tpu_custom_call.1} parent=5 // pred_region
        %s203 = ssub.s32 %s15, 2
        // Predicated region
        $region45: #{tpu_custom_call.1} parent=43 // pred_check
          %p204 = pneg %p91
        $region46: #{tpu_custom_call.1} parent=43 // pred_check_branch
          %206 = sbr.rel (%p204) target = $region48
        $region47: #{tpu_custom_call.1} parent=43 // pred_region
          %s207 = sand.u32 %s76, 1
          %s208 = scalar_lea.sflag [#allocation4], %s207
          %s209 = sand.u32 %s76, 1
          %s210 = smul.addr %s209, 8
          %s211 = scalar_lea.vmem [#allocation7], %s210
          %213 = dma.done %s208, 128
        $region48: #{tpu_custom_call.1} parent=43 // pred_fallthru
          _
      $region44: #{tpu_custom_call.1} parent=5 // pred_fallthru
        _
    $region6: #{tpu_custom_call.1} parent=1 // loop_footer
      %s19 = sadd.s32 1, %s15
    $region7: #{tpu_custom_call.1} parent=1 // loop_footer_branch
      %14 = sbr.rel target = $region3
    $region8: #{tpu_custom_call.1} parent=1 // loop_exit
      _
    %214 = vsyncpa [#allocation3], 1
    %s215 = scalar_lea.sflag [#allocation3], 1
    %216 = vsyncpa %s215, 1
    %217 = vsyncpa [#allocation6], 1
    %s218 = scalar_lea.sflag [#allocation6], 1
    %219 = vsyncpa %s218, 1
    %220 = vsyncpa [#allocation4], 1
    %s221 = scalar_lea.sflag [#allocation4], 1
    %222 = vsyncpa %s221, 1

// kernel: tpu_custom_call.1
$region0: #{tpu_custom_call.1}
  #allocation0 [shape = 'u32[]', space=smem, size = 0x4, offset = 0x4, fixed_abs, tag = 'smem constant byte address 0x4 - core index']
  #allocation1 [shape = 'u32[72,128]{1,0:T(1,128)}', space=vmem, size = 0x9000, scoped, tag = 'internal scratch']
  %s0 = inlined_call_operand.hbm [shape: f32[2,8,64], index: 0, kind: input, shape index: {}]
  %s1 = inlined_call_operand.hbm [shape: f32[1,64], index: 1, kind: input, shape index: {}]
  %s2 = inlined_call_operand.vmem [shape: f32[1,64], index: 2, kind: input, shape index: {}]
  %s3 = inlined_call_operand.hbm [shape: f32[64,192], index: 3, kind: input, shape index: {}]
  %s4 = inlined_call_operand.vmem [shape: f32[1,192], index: 4, kind: input, shape index: {}]
  %s5 = inlined_call_operand.hbm [shape: f32[2,4,8,16], index: 5, kind: output, shape index: {0}]
  %s6 = inlined_call_operand.hbm [shape: f32[2,4,8,16], index: 6, kind: output, shape index: {1}]
  %s7 = inlined_call_operand.hbm [shape: f32[2,4,8,16], index: 7, kind: output, shape index: {2}]
  %8 = xla_tuple %s5, %s6, %s7
  %s9 = sld [smem:[#allocation0]]
  $region81: #{tpu_custom_call.1} parent=0
    _
  %s11 = ssub.s32 1, %s9
  %s12 = scalar_select 0, %s11, %s9
  $region1: #{tpu_custom_call.1} parent=0
    #allocation2 [shape = 'u8[8192]{0}', space=vmem, size = 0x2000, scoped, tag = 'input window, operand 0']
    #allocation3 [shape = 's32[2]{0}', space=sflag, size = 0x8, scoped, tag = 'scoped memory for tpu_custom_call.1']
    #allocation4 [shape = 's32[2]{0}', space=sflag, size = 0x8, scoped, tag = 'scoped memory for tpu_custom_call.1']
    #allocation5 [shape = 'u8[512]{0}', space=vmem, size = 0x400, scoped, tag = 'input window, operand 1, single buffered']
    #allocation6 [shape = 's32[1]{0}', space=sflag, size = 0x4, scoped, tag = 'scoped memory for tpu_custom_call.1']
    #allocation7 [shape = 'u8[65536]{0}', space=vmem, size = 0x10000, scoped, tag = 'input window, operand 3, single buffered']
    #allocation8 [shape = 'u8[32768]{0}', space=vmem, size = 0x8000, scoped, tag = 'output window, operand 0']
    #allocation9 [shape = 'u8[32768]{0}', space=vmem, size = 0x8000, scoped, tag = 'output window, operand 1']
    #allocation10 [shape = 's32[2]{0}', space=sflag, size = 0x8, scoped, tag = 'scoped memory for tpu_custom_call.1']
    #allocation11 [shape = 'u8[32768]{0}', space=vmem, size = 0x8000, scoped, tag = 'output window, operand 2']
    %13 = vsyncpa [#allocation3], 0
    %s14 = scalar_lea.sflag [#allocation3], 1
    %15 = vsyncpa %s14, 0
    %16 = vsyncpa [#allocation6], 0
    %17 = vsyncpa [#allocation4], 0
    %s18 = scalar_lea.sflag [#allocation4], 1
    %19 = vsyncpa %s18, 0
    %20 = vsyncpa [#allocation10], 0
    %s21 = scalar_lea.sflag [#allocation10], 1
    %22 = vsyncpa %s21, 0
    loop: start=0, step=1, limit=4
    $region2: #{tpu_custom_call.1} parent=1 // loop_pre_header
      _
    $region3: #{tpu_custom_call.1} parent=1 // loop_header
      %s24 = sphi 0, %s28
      %p25 = scmp.ge.s32.totalorder %s24, 4
      %s31 = sphi 0, %s43
      %s32 = sphi 0, %s39
      %s33 = sphi 0, %s31
      %s34 = sphi 0, %s32
      %s35 = sphi 0, %s33
      %s36 = sphi 0, %s34
      %s48 = sphi 0, %s50
      %s51 = sphi 0, %s48
      %s52 = sphi 0, %s51
      %s68 = sphi 0, %s52
      %s72 = sphi 0, %s72
      %s74 = sphi 0, %s72
      %s75 = sphi 0, %s74
      %s89 = sphi 0, %s75
      %s93 = sphi 0, %s93
      %s95 = sphi 0, %s93
      %s96 = sphi 0, %s95
      %s110 = sphi 0, %s96
      %s114 = sphi 0, %s114
      %s116 = sphi 0, %s114
      %s117 = sphi 0, %s116
      %s131 = sphi 0, %s117
      %s135 = sphi 0, %s135
      %s137 = sphi 0, %s135
      %s138 = sphi 0, %s137
      %s152 = sphi 0, %s138
      %s160 = sphi 0, %s162
      %s163 = sphi 0, %s160
      %s164 = sphi 0, %s163
      %s180 = sphi 0, %s164
      %s188 = sphi 0, %s190
      %s191 = sphi 0, %s188
      %s192 = sphi 0, %s191
      %s208 = sphi 0, %s192
      %s216 = sphi 0, %s218
      %s219 = sphi 0, %s216
      %s220 = sphi 0, %s219
      %s236 = sphi 0, %s220
    $region4: #{tpu_custom_call.1} parent=1 // loop_header_branch
      %27 = sbr.rel (%p25) target = $region8
    $region5: #{tpu_custom_call.1} parent=1 // loop_body
      %s29 = ssub.s32 %s24, 1
      %s30 = ssub.s32 %s24, 2
      %s37 = sadd.s32 1, %s32
      %p38 = scmp.ge.s32.totalorder %s37, 1
      %s39 = scalar_select %p38, 0, %s37
      %s40 = sadd.s32 1, %s31
      %s41 = scalar_select %p38, %s40, %s31
      %p42 = scmp.ge.s32.totalorder %s41, 2
      %s43 = scalar_select %p42, 0, %s41
      %s44 = ssub.s32 %s31, %s43
      %s45 = ssub.s32 %s32, %s39
      %s46 = sor.u32 %s44, %s45
      %p47 = scmp.eq.s32.totalorder %s46, 0
      %s49 = sadd.s32 %s48, 1
      %s50 = scalar_select %p47, %s48, %s49
      %p53 = pneg %p47
      %p54 = scmp.eq.s32.totalorder %s24, 1
      %p55 = por %p53, %p54
      %p56 = scmp.ne.s32.totalorder %s48, %s51
      %p57 = scmp.eq.s32.totalorder %s24, 0
      %p58 = por %p56, %p57
      %p59 = scmp.ne.s32.totalorder %s48, %s51
      %p60 = scmp.eq.s32.totalorder %s29, 1
      %p61 = por %p59, %p60
      %p62 = scmp.ne.s32.totalorder %s51, %s52
      %p63 = scmp.eq.s32.totalorder %s29, 0
      %p64 = por %p62, %p63
      %p65 = scmp.ne.s32.totalorder %s51, %s52
      %p66 = scmp.eq.s32.totalorder %s30, 1
      %p67 = por %p65, %p66
      %p69 = scmp.ne.s32.totalorder %s52, %s68
      %p70 = scmp.eq.s32.totalorder %s30, 0
      %p71 = por %p69, %p70
      %s73 = sadd.s32 %s72, 1
      %p76 = scmp.eq.s32.totalorder %s24, 1
      %p77 = scmp.ne.s32.totalorder %s72, %s74
      %p78 = scmp.eq.s32.totalorder %s24, 0
      %p79 = por %p77, %p78
      %p80 = scmp.ne.s32.totalorder %s72, %s74
      %p81 = scmp.eq.s32.totalorder %s29, 1
      %p82 = por %p80, %p81
      %p83 = scmp.ne.s32.totalorder %s74, %s75
      %p84 = scmp.eq.s32.totalorder %s29, 0
      %p85 = por %p83, %p84
      %p86 = scmp.ne.s32.totalorder %s74, %s75
      %p87 = scmp.eq.s32.totalorder %s30, 1
      %p88 = por %p86, %p87
      %p90 = scmp.ne.s32.totalorder %s75, %s89
      %p91 = scmp.eq.s32.totalorder %s30, 0
      %p92 = por %p90, %p91
      %s94 = sadd.s32 %s93, 1
      %p97 = scmp.eq.s32.totalorder %s24, 1
      %p98 = scmp.ne.s32.totalorder %s93, %s95
      %p99 = scmp.eq.s32.totalorder %s24, 0
      %p100 = por %p98, %p99
      %p101 = scmp.ne.s32.totalorder %s93, %s95
      %p102 = scmp.eq.s32.totalorder %s29, 1
      %p103 = por %p101, %p102
      %p104 = scmp.ne.s32.totalorder %s95, %s96
      %p105 = scmp.eq.s32.totalorder %s29, 0
      %p106 = por %p104, %p105
      %p107 = scmp.ne.s32.totalorder %s95, %s96
      %p108 = scmp.eq.s32.totalorder %s30, 1
      %p109 = por %p107, %p108
      %p111 = scmp.ne.s32.totalorder %s96, %s110
      %p112 = scmp.eq.s32.totalorder %s30, 0
      %p113 = por %p111, %p112
      %s115 = sadd.s32 %s114, 1
      %p118 = scmp.eq.s32.totalorder %s24, 1
      %p119 = scmp.ne.s32.totalorder %s114, %s116
      %p120 = scmp.eq.s32.totalorder %s24, 0
      %p121 = por %p119, %p120
      %p122 = scmp.ne.s32.totalorder %s114, %s116
      %p123 = scmp.eq.s32.totalorder %s29, 1
      %p124 = por %p122, %p123
      %p125 = scmp.ne.s32.totalorder %s116, %s117
      %p126 = scmp.eq.s32.totalorder %s29, 0
      %p127 = por %p125, %p126
      %p128 = scmp.ne.s32.totalorder %s116, %s117
      %p129 = scmp.eq.s32.totalorder %s30, 1
      %p130 = por %p128, %p129
      %p132 = scmp.ne.s32.totalorder %s117, %s131
      %p133 = scmp.eq.s32.totalorder %s30, 0
      %p134 = por %p132, %p133
      %s136 = sadd.s32 %s135, 1
      %p139 = scmp.eq.s32.totalorder %s24, 1
      %p140 = scmp.ne.s32.totalorder %s135, %s137
      %p141 = scmp.eq.s32.totalorder %s24, 0
      %p142 = por %p140, %p141
      %p143 = scmp.ne.s32.totalorder %s135, %s137
      %p144 = scmp.eq.s32.totalorder %s29, 1
      %p145 = por %p143, %p144
      %p146 = scmp.ne.s32.totalorder %s137, %s138
      %p147 = scmp.eq.s32.totalorder %s29, 0
      %p148 = por %p146, %p147
      %p149 = scmp.ne.s32.totalorder %s137, %s138
      %p150 = scmp.eq.s32.totalorder %s30, 1
      %p151 = por %p149, %p150
      %p153 = scmp.ne.s32.totalorder %s138, %s152
      %p154 = scmp.eq.s32.totalorder %s30, 0
      %p155 = por %p153, %p154
      %s156 = ssub.s32 %s31, %s43
      %s157 = ssub.s32 %s32, %s39
      %s158 = sor.u32 %s156, %s157
      %p159 = scmp.eq.s32.totalorder %s158, 0
      %s161 = sadd.s32 %s160, 1
      %s162 = scalar_select %p159, %s160, %s161
      %p165 = pneg %p159
      %p166 = scmp.eq.s32.totalorder %s24, 1
      %p167 = por %p165, %p166
      %p168 = scmp.ne.s32.totalorder %s160, %s163
      %p169 = scmp.eq.s32.totalorder %s24, 0
      %p170 = por %p168, %p169
      %p171 = scmp.ne.s32.totalorder %s160, %s163
      %p172 = scmp.eq.s32.totalorder %s29, 1
      %p173 = por %p171, %p172
      %p174 = scmp.ne.s32.totalorder %s163, %s164
      %p175 = scmp.eq.s32.totalorder %s29, 0
      %p176 = por %p174, %p175
      %p177 = scmp.ne.s32.totalorder %s163, %s164
      %p178 = scmp.eq.s32.totalorder %s30, 1
      %p179 = por %p177, %p178
      %p181 = scmp.ne.s32.totalorder %s164, %s180
      %p182 = scmp.eq.s32.totalorder %s30, 0
      %p183 = por %p181, %p182
      %s184 = ssub.s32 %s31, %s43
      %s185 = ssub.s32 %s32, %s39
      %s186 = sor.u32 %s184, %s185
      %p187 = scmp.eq.s32.totalorder %s186, 0
      %s189 = sadd.s32 %s188, 1
      %s190 = scalar_select %p187, %s188, %s189
      %p193 = pneg %p187
      %p194 = scmp.eq.s32.totalorder %s24, 1
      %p195 = por %p193, %p194
      %p196 = scmp.ne.s32.totalorder %s188, %s191
      %p197 = scmp.eq.s32.totalorder %s24, 0
      %p198 = por %p196, %p197
      %p199 = scmp.ne.s32.totalorder %s188, %s191
      %p200 = scmp.eq.s32.totalorder %s29, 1
      %p201 = por %p199, %p200
      %p202 = scmp.ne.s32.totalorder %s191, %s192
      %p203 = scmp.eq.s32.totalorder %s29, 0
      %p204 = por %p202, %p203
      %p205 = scmp.ne.s32.totalorder %s191, %s192
      %p206 = scmp.eq.s32.totalorder %s30, 1
      %p207 = por %p205, %p206
      %p209 = scmp.ne.s32.totalorder %s192, %s208
      %p210 = scmp.eq.s32.totalorder %s30, 0
      %p211 = por %p209, %p210
      %s212 = ssub.s32 %s31, %s43
      %s213 = ssub.s32 %s32, %s39
      %s214 = sor.u32 %s212, %s213
      %p215 = scmp.eq.s32.totalorder %s214, 0
      %s217 = sadd.s32 %s216, 1
      %s218 = scalar_select %p215, %s216, %s217
      %p221 = pneg %p215
      %p222 = scmp.eq.s32.totalorder %s24, 1
      %p223 = por %p221, %p222
      %p224 = scmp.ne.s32.totalorder %s216, %s219
      %p225 = scmp.eq.s32.totalorder %s24, 0
      %p226 = por %p224, %p225
      %p227 = scmp.ne.s32.totalorder %s216, %s219
      %p228 = scmp.eq.s32.totalorder %s29, 1
      %p229 = por %p227, %p228
      %p230 = scmp.ne.s32.totalorder %s219, %s220
      %p231 = scmp.eq.s32.totalorder %s29, 0
      %p232 = por %p230, %p231
      %p233 = scmp.ne.s32.totalorder %s219, %s220
      %p234 = scmp.eq.s32.totalorder %s30, 1
      %p235 = por %p233, %p234
      %p237 = scmp.ne.s32.totalorder %s220, %s236
      %p238 = scmp.eq.s32.totalorder %s30, 0
      %p239 = por %p237, %p238
      %p240 = scmp.le.s32.totalorder 1, %s24
      %p241 = scmp.lt.s32.totalorder %s24, 3
      %p242 = pnand %p240, %p241
      %p243 = pneg %p242
      // Predicated region
      $region9: #{tpu_custom_call.1} parent=5 // pred_check
        _
      $region10: #{tpu_custom_call.1} parent=5 // pred_check_branch
        %245 = sbr.rel (%p242) target = $region12
      $region11: #{tpu_custom_call.1} parent=5 // pred_region
        %s246 = ssub.s32 %s24, 1
        // Predicated region
        $region13: #{tpu_custom_call.1} parent=11 // pred_check
          %p247 = pneg %p85
        $region14: #{tpu_custom_call.1} parent=11 // pred_check_branch
          %249 = sbr.rel (%p247) target = $region16
        $region15: #{tpu_custom_call.1} parent=11 // pred_region
          %251 = vsyncadd [#allocation6], 0
          %s253 = sshll.u32 %s1, 4
          %s254 = int_to_ptr.hbm [resolvable:$true] %s253
          %s255 = sshll.u32 [#allocation5], 4
          %s256 = int_to_ptr.vmem [resolvable:$true] %s255
          %258 = dma.hbm_to_vmem [thread:$0]  %s254, 16, %s256, [#allocation6]
        $region16: #{tpu_custom_call.1} parent=11 // pred_fallthru
          _
        // Predicated region
        $region17: #{tpu_custom_call.1} parent=11 // pred_check
          %p259 = pneg %p106
        $region18: #{tpu_custom_call.1} parent=11 // pred_check_branch
          %261 = sbr.rel (%p259) target = $region20
        $region19: #{tpu_custom_call.1} parent=11 // pred_region
          _
        $region20: #{tpu_custom_call.1} parent=11 // pred_fallthru
          _
        // Predicated region
        $region21: #{tpu_custom_call.1} parent=11 // pred_check
          %p262 = pneg %p127
        $region22: #{tpu_custom_call.1} parent=11 // pred_check_branch
          %264 = sbr.rel (%p262) target = $region24
        $region23: #{tpu_custom_call.1} parent=11 // pred_region
          %266 = vsyncadd [#allocation6], 0
          %s267 = sshll.u32 %s3, 4
          %s268 = int_to_ptr.hbm [resolvable:$true] %s267
          %s269 = sshll.u32 [#allocation7], 4
          %s270 = int_to_ptr.vmem [resolvable:$true] %s269
          %275 = dma.hbm_to_vmem [thread:$0]  %s268, 2048, %s270, [#allocation6], 256, 256, 16
        $region24: #{tpu_custom_call.1} parent=11 // pred_fallthru
          _
        // Predicated region
        $region25: #{tpu_custom_call.1} parent=11 // pred_check
          %p276 = pneg %p148
        $region26: #{tpu_custom_call.1} parent=11 // pred_check_branch
          %278 = sbr.rel (%p276) target = $region28
        $region27: #{tpu_custom_call.1} parent=11 // pred_region
          _
        $region28: #{tpu_custom_call.1} parent=11 // pred_fallthru
          _
      $region12: #{tpu_custom_call.1} parent=5 // pred_fallthru
        _
      %p279 = scmp.lt.s32.totalorder %s24, 2
      // Predicated region
      $region29: #{tpu_custom_call.1} parent=5 // pred_check
        %p280 = pneg %p279
      $region30: #{tpu_custom_call.1} parent=5 // pred_check_branch
        %282 = sbr.rel (%p280) target = $region32
      $region31: #{tpu_custom_call.1} parent=5 // pred_region
        // Predicated region
        $region33: #{tpu_custom_call.1} parent=31 // pred_check
          %p283 = pneg %p58
        $region34: #{tpu_custom_call.1} parent=31 // pred_check_branch
          %285 = sbr.rel (%p283) target = $region36
        $region35: #{tpu_custom_call.1} parent=31 // pred_region
          %s286 = sand.u32 %s48, 1
          %s287 = scalar_lea.sflag [#allocation3], %s286
          %s288 = sand.u32 %s48, 1
          %s289 = smul.addr %s288, 8
          %s290 = scalar_lea.vmem [#allocation2], %s289
          %292 = vsyncadd %s287, 0
          %s293 = sadd.s32 %s32, %s31
          %s294 = smul.addr %s293, 8
          %s295 = scalar_lea.hbm %s0, %s294
          %s297 = sshll.u32 %s295, 4
          %s298 = int_to_ptr.hbm [resolvable:$true] %s297
          %s299 = sshll.u32 %s290, 4
          %s300 = int_to_ptr.vmem [resolvable:$true] %s299
          %302 = dma.hbm_to_vmem [thread:$0]  %s298, 128, %s300, %s287
        $region36: #{tpu_custom_call.1} parent=31 // pred_fallthru
          _
      $region32: #{tpu_custom_call.1} parent=5 // pred_fallthru
        _
      %p303 = scmp.le.s32.totalorder 1, %s24
      %p304 = scmp.lt.s32.totalorder %s24, 3
      %p305 = pnand %p303, %p304
      %p306 = pneg %p305
      // Predicated region
      $region37: #{tpu_custom_call.1} parent=5 // pred_check
        _
      $region38: #{tpu_custom_call.1} parent=5 // pred_check_branch
        %308 = sbr.rel (%p305) target = $region40
      $region39: #{tpu_custom_call.1} parent=5 // pred_region
        %s309 = ssub.s32 %s24, 1
        %s310 = sand.u32 %s51, 1
        %s311 = scalar_lea.sflag [#allocation3], %s310
        %s312 = sand.u32 %s51, 1
        %s313 = smul.addr %s312, 8
        %s314 = scalar_lea.vmem [#allocation2], %s313
        // Predicated region
        $region41: #{tpu_custom_call.1} parent=39 // pred_check
          %p315 = pneg %p64
        $region42: #{tpu_custom_call.1} parent=39 // pred_check_branch
          %317 = sbr.rel (%p315) target = $region44
        $region43: #{tpu_custom_call.1} parent=39 // pred_region
          %319 = dma.done %s311, 128
        $region44: #{tpu_custom_call.1} parent=39 // pred_fallthru
          _
        // Predicated region
        $region45: #{tpu_custom_call.1} parent=39 // pred_check
          %p320 = pneg %p85
        $region46: #{tpu_custom_call.1} parent=39 // pred_check_branch
          %322 = sbr.rel (%p320) target = $region48
        $region47: #{tpu_custom_call.1} parent=39 // pred_region
          %324 = dma.done [#allocation6], 16
        $region48: #{tpu_custom_call.1} parent=39 // pred_fallthru
          _
        // Predicated region
        $region49: #{tpu_custom_call.1} parent=39 // pred_check
          %p325 = pneg %p127
        $region50: #{tpu_custom_call.1} parent=39 // pred_check_branch
          %327 = sbr.rel (%p325) target = $region52
        $region51: #{tpu_custom_call.1} parent=39 // pred_region
          %329 = dma.done [#allocation6], 2048
        $region52: #{tpu_custom_call.1} parent=39 // pred_fallthru
          _
        %s330 = sand.u32 %s51, 1
        %s331 = scalar_lea.sflag [#allocation3], %s330
        %s332 = sand.u32 %s51, 1
        %s333 = smul.addr %s332, 8
        %s334 = scalar_lea.vmem [#allocation2], %s333
        %p335 = pneg %p64
        %p336 = pneg %p61
        %p337 = pneg %p85
        %p338 = pneg %p82
        %p339 = pneg %p106
        %p340 = pneg %p103
        %p341 = pneg %p127
        %p342 = pneg %p124
        %p343 = pneg %p148
        %p344 = pneg %p145
        %p345 = pneg %p176
        %p346 = pneg %p173
        %s347 = sand.u32 %s163, 1
        %s348 = scalar_lea.sflag [#allocation4], %s347
        %s349 = sand.u32 %s163, 1
        %s350 = smul.addr %s349, 32
        %s351 = scalar_lea.vmem [#allocation8], %s350
        %p352 = pneg %p204
        %p353 = pneg %p201
        %s354 = sand.u32 %s29, 1
        %s355 = scalar_lea.sflag [#allocation10], %s354
        %s356 = sand.u32 %s191, 1
        %s357 = smul.addr %s356, 32
        %s358 = scalar_lea.vmem [#allocation9], %s357
        %p359 = pneg %p232
        %p360 = pneg %p229
        %s361 = sand.u32 %s29, 1
        %s362 = scalar_lea.sflag [#allocation10], %s361
        %s363 = sand.u32 %s219, 1
        %s364 = smul.addr %s363, 32
        %s365 = scalar_lea.vmem [#allocation11], %s364
        %v366 = vld [vmem:[%s314] sm:$0xff]
        %vm367 = vcmask 523264
        %v368 = vsel %vm367, %v366, 0.0
        %369 = vadd.xlane.f32.xlu0 %v368
        %v370 = vpop.xlane.xlu0 %369
        %v371 = vrcp.pop 64.0
        %v372 = vmul.f32 64.0, %v371
        %v373 = vsub.f32 1.0, %v372
        %v374 = vmul.f32 %v371, %v373
        %v375 = vadd.f32 %v371, %v374
        %vm376 = vweird.f32 %v371
        %v377 = vsel %vm376, %v371, %v375
        %v378 = vmul.f32 %v370, %v377
        %v379 = vsub.f32 %v366, %v378
        %v380 = vmul.f32 %v379, %v379
        %v381 = vsel %vm367, %v380, 0.0
        %382 = vadd.xlane.f32.xlu0 %v381
        %v383 = vpop.xlane.xlu0 %382
        %v384 = vmul.f32 %v383, %v377
        %v385 = vadd.f32 %v384, 1e-05
        %v386 = vrsqrt.pop %v385
        %v387 = vmul.f32 %v386, %v385
        %v388 = vmul.f32 %v387, %v386
        %v389 = vmul.f32 0.5, %v388
        %v390 = vsub.f32 1.5, %v389
        %v391 = vmul.f32 %v386, %v390
        %vm392 = vweird.f32 %v385
        %vm393 = vweird.f32 %v386
        %vm394 = vmor %vm392, %vm393
        %v395 = vsel %vm394, %v386, %v391
        %v396 = vmul.f32 %v379, %v395
        %v397 = vld [vmem:[#allocation5] sm:$0x1]
        %v399 = vperm.slane %v397, 0
        %v401 = vmul.f32 %v396, %v399
        %v402 = vld [vmem:[%s2] sm:$0x1]
        %v404 = vperm.slane %v402, 0
        %v406 = vadd.f32 %v401, %v404
        %v407 = vld [vmem:[#allocation7] sm:$0xff]
        %v408 = vld [vmem:[#allocation7 + $0x8] sm:$0xff]
        %v409 = vld [vmem:[#allocation7 + $0x10] sm:$0xff]
        %v410 = vld [vmem:[#allocation7 + $0x18] sm:$0xff]
        %v411 = vld [vmem:[#allocation7 + $0x20] sm:$0xff]
        %v412 = vld [vmem:[#allocation7 + $0x28] sm:$0xff]
        %v413 = vld [vmem:[#allocation7 + $0x30] sm:$0xff]
        %v414 = vld [vmem:[#allocation7 + $0x38] sm:$0xff]
        %v415 = vld [vmem:[#allocation7 + $0x40] sm:$0xff]
        %v416 = vld [vmem:[#allocation7 + $0x48] sm:$0xff]
        %v417 = vld [vmem:[#allocation7 + $0x50] sm:$0xff]
        %v418 = vld [vmem:[#allocation7 + $0x58] sm:$0xff]
        %v419 = vld [vmem:[#allocation7 + $0x60] sm:$0xff]
        %v420 = vld [vmem:[#allocation7 + $0x68] sm:$0xff]
        %v421 = vld [vmem:[#allocation7 + $0x70] sm:$0xff]
        %v422 = vld [vmem:[#allocation7 + $0x78] sm:$0xff]
        %v423 = vld [vmem:[%s4] sm:$0x3]
        %v425 = vperm.slane %v423, 0
        %v426 = vperm.slane %v423, 1
        %v430 = vsel %vm367, %v406, 0
        %432 = vmatpush.msra.mxu0 0.0
        %433 = vmatpush.msra.mxu0 0.0
        %434 = vmatpush.msra.mxu0 0.0
        %435 = vmatpush.msra.mxu0 0.0
        %436 = vmatpush.msra.mxu0 0.0
        %437 = vmatpush.msra.mxu0 0.0
        %438 = vmatpush.msra.mxu0 0.0
        %439 = vmatpush.msra.mxu0 0.0
        %440 = vmatpush.msra.mxu0 %v421
        %441 = vmatpush.msra.mxu0 %v419
        %442 = vmatpush.msra.mxu0 %v417
        %443 = vmatpush.msra.mxu0 %v415
        %444 = vmatpush.msra.mxu0 %v413
        %445 = vmatpush.msra.mxu0 %v411
        %446 = vmatpush.msra.mxu0 %v409
        %447 = vmatpush.msra.mxu0 %v407
        %448 = vmatmul.f32.gmra.mxu0 %v430
        %v449 = vpop.f32.mrf.mxu0
        %v450 = vadd.f32 %v425, %v449
        %451 = vdwg.mxu0
        %452 = vmatpush.msra.mxu0 0.0
        %453 = vmatpush.msra.mxu0 0.0
        %454 = vmatpush.msra.mxu0 0.0
        %455 = vmatpush.msra.mxu0 0.0
        %456 = vmatpush.msra.mxu0 0.0
        %457 = vmatpush.msra.mxu0 0.0
        %458 = vmatpush.msra.mxu0 0.0
        %459 = vmatpush.msra.mxu0 0.0
        %460 = vmatpush.msra.mxu0 %v422
        %461 = vmatpush.msra.mxu0 %v420
        %462 = vmatpush.msra.mxu0 %v418
        %463 = vmatpush.msra.mxu0 %v416
        %464 = vmatpush.msra.mxu0 %v414
        %465 = vmatpush.msra.mxu0 %v412
        %466 = vmatpush.msra.mxu0 %v410
        %467 = vmatpush.msra.mxu0 %v408
        %468 = vmatmul.f32.gmra.mxu0 %v430
        %v469 = vpop.f32.mrf.mxu0
        %v470 = vadd.f32 %v426, %v469
        %471 = vdwg.mxu0
        %v472 = vmul.f32 %v450, 0.25
        %vm473 = vcmask 130048
        %474 = vst.msk [vmem:[%s351] sm:$0xff] %vm473, %v472
        %476 = vrot.lane.b32.xlu0 %v450, 64
        %v477 = vpop.permute.xlu0 %476
        %479 = vst.msk [vmem:[%s358] sm:$0xff] %vm473, %v477
        %480 = vst.msk [vmem:[%s365] sm:$0xff] %vm473, %v470
        %482 = vrot.lane.b32.xlu0 %v472, 112
        %v483 = vpop.permute.xlu0 %482
        %s485 = scalar_lea.vmem %s351, 8 [#allocation8]
        %486 = vst.msk [vmem:[%s485] sm:$0xff] %vm473, %v483
        %487 = vrot.lane.b32.xlu0 %v450, 48
        %v488 = vpop.permute.xlu0 %487
        %s490 = scalar_lea.vmem %s358, 8 [#allocation9]
        %491 = vst.msk [vmem:[%s490] sm:$0xff] %vm473, %v488
        %493 = vrot.lane.b32.xlu0 %v470, 112
        %v494 = vpop.permute.xlu0 %493
        %s496 = scalar_lea.vmem %s365, 8 [#allocation11]
        %497 = vst.msk [vmem:[%s496] sm:$0xff] %vm473, %v494
        %498 = vrot.lane.b32.xlu0 %v472, 96
        %v499 = vpop.permute.xlu0 %498
        %s501 = scalar_lea.vmem %s351, 16 [#allocation8]
        %502 = vst.msk [vmem:[%s501] sm:$0xff] %vm473, %v499
        %503 = vrot.lane.b32.xlu0 %v450, 32
        %v504 = vpop.permute.xlu0 %503
        %s506 = scalar_lea.vmem %s358, 16 [#allocation9]
        %507 = vst.msk [vmem:[%s506] sm:$0xff] %vm473, %v504
        %508 = vrot.lane.b32.xlu0 %v470, 96
        %v509 = vpop.permute.xlu0 %508
        %s511 = scalar_lea.vmem %s365, 16 [#allocation11]
        %512 = vst.msk [vmem:[%s511] sm:$0xff] %vm473, %v509
        %513 = vrot.lane.b32.xlu0 %v472, 80
        %v514 = vpop.permute.xlu0 %513
        %s516 = scalar_lea.vmem %s351, 24 [#allocation8]
        %517 = vst.msk [vmem:[%s516] sm:$0xff] %vm473, %v514
        %518 = vrot.lane.b32.xlu0 %v450, 16
        %v519 = vpop.permute.xlu0 %518
        %s521 = scalar_lea.vmem %s358, 24 [#allocation9]
        %522 = vst.msk [vmem:[%s521] sm:$0xff] %vm473, %v519
        %523 = vrot.lane.b32.xlu0 %v470, 80
        %v524 = vpop.permute.xlu0 %523
        %s526 = scalar_lea.vmem %s365, 24 [#allocation11]
        %527 = vst.msk [vmem:[%s526] sm:$0xff] %vm473, %v524
        %s528 = sand.u32 %s163, 1
        %s529 = scalar_lea.sflag [#allocation4], %s528
        %s530 = sand.u32 %s163, 1
        %s531 = smul.addr %s530, 32
        %s532 = scalar_lea.vmem [#allocation8], %s531
        %s533 = sand.u32 %s29, 1
        %s534 = scalar_lea.sflag [#allocation10], %s533
        %s535 = sand.u32 %s191, 1
        %s536 = smul.addr %s535, 32
        %s537 = scalar_lea.vmem [#allocation9], %s536
        %s538 = sand.u32 %s29, 1
        %s539 = scalar_lea.sflag [#allocation10], %s538
        %s540 = sand.u32 %s219, 1
        %s541 = smul.addr %s540, 32
        %s542 = scalar_lea.vmem [#allocation11], %s541
        // Predicated region
        $region53: #{tpu_custom_call.1} parent=39 // pred_check
          %p543 = pneg %p173
        $region54: #{tpu_custom_call.1} parent=39 // pred_check_branch
          %545 = sbr.rel (%p543) target = $region56
        $region55: #{tpu_custom_call.1} parent=39 // pred_region
          %547 = vsyncadd %s529, 0
          %s548 = smul.addr %s33, 4
          %s549 = sadd.s32 %s34, %s548
          %s550 = smul.addr %s549, 8
          %s551 = scalar_lea.hbm %s5, %s550
          %s552 = sshll.u32 %s532, 4
          %s553 = int_to_ptr.vmem [resolvable:$true] %s552
          %s554 = sshll.u32 %s551, 4
          %s555 = int_to_ptr.hbm [resolvable:$true] %s554
          %560 = dma.vmem_to_hbm [thread:$0]  %s553, 512, %s555, %s529, 128, 128, 8
        $region56: #{tpu_custom_call.1} parent=39 // pred_fallthru
          _
        // Predicated region
        $region57: #{tpu_custom_call.1} parent=39 // pred_check
          %p561 = pneg %p201
        $region58: #{tpu_custom_call.1} parent=39 // pred_check_branch
          %563 = sbr.rel (%p561) target = $region60
        $region59: #{tpu_custom_call.1} parent=39 // pred_region
          %565 = vsyncadd %s534, 0
          %s566 = smul.addr %s33, 4
          %s567 = sadd.s32 %s34, %s566
          %s568 = smul.addr %s567, 8
          %s569 = scalar_lea.hbm %s6, %s568
          %s570 = sshll.u32 %s537, 4
          %s571 = int_to_ptr.vmem [resolvable:$true] %s570
          %s572 = sshll.u32 %s569, 4
          %s573 = int_to_ptr.hbm [resolvable:$true] %s572
          %578 = dma.vmem_to_hbm [thread:$0]  %s571, 512, %s573, %s534, 128, 128, 8
        $region60: #{tpu_custom_call.1} parent=39 // pred_fallthru
          _
        // Predicated region
        $region61: #{tpu_custom_call.1} parent=39 // pred_check
          %p579 = pneg %p229
        $region62: #{tpu_custom_call.1} parent=39 // pred_check_branch
          %581 = sbr.rel (%p579) target = $region64
        $region63: #{tpu_custom_call.1} parent=39 // pred_region
          %583 = vsyncadd %s539, 0
          %s584 = smul.addr %s33, 4
          %s585 = sadd.s32 %s34, %s584
          %s586 = smul.addr %s585, 8
          %s587 = scalar_lea.hbm %s7, %s586
          %s588 = sshll.u32 %s542, 4
          %s589 = int_to_ptr.vmem [resolvable:$true] %s588
          %s590 = sshll.u32 %s587, 4
          %s591 = int_to_ptr.hbm [resolvable:$true] %s590
          %596 = dma.vmem_to_hbm [thread:$0]  %s589, 512, %s591, %s539, 128, 128, 8
        $region64: #{tpu_custom_call.1} parent=39 // pred_fallthru
          _
      $region40: #{tpu_custom_call.1} parent=5 // pred_fallthru
        _
      %p597 = scmp.le.s32.totalorder 2, %s24
      // Predicated region
      $region65: #{tpu_custom_call.1} parent=5 // pred_check
        %p598 = pneg %p597
      $region66: #{tpu_custom_call.1} parent=5 // pred_check_branch
        %600 = sbr.rel (%p598) target = $region68
      $region67: #{tpu_custom_call.1} parent=5 // pred_region
        %s601 = ssub.s32 %s24, 2
        // Predicated region
        $region69: #{tpu_custom_call.1} parent=67 // pred_check
          %p602 = pneg %p179
        $region70: #{tpu_custom_call.1} parent=67 // pred_check_branch
          %604 = sbr.rel (%p602) target = $region72
        $region71: #{tpu_custom_call.1} parent=67 // pred_region
          %s605 = sand.u32 %s164, 1
          %s606 = scalar_lea.sflag [#allocation4], %s605
          %s607 = sand.u32 %s164, 1
          %s608 = smul.addr %s607, 32
          %s609 = scalar_lea.vmem [#allocation8], %s608
          %611 = dma.done %s606, 512
        $region72: #{tpu_custom_call.1} parent=67 // pred_fallthru
          _
        // Predicated region
        $region73: #{tpu_custom_call.1} parent=67 // pred_check
          %p612 = pneg %p207
        $region74: #{tpu_custom_call.1} parent=67 // pred_check_branch
          %614 = sbr.rel (%p612) target = $region76
        $region75: #{tpu_custom_call.1} parent=67 // pred_region
          %s615 = sand.u32 %s30, 1
          %s616 = scalar_lea.sflag [#allocation10], %s615
          %s617 = sand.u32 %s192, 1
          %s618 = smul.addr %s617, 32
          %s619 = scalar_lea.vmem [#allocation9], %s618
          %621 = dma.done %s616, 512
        $region76: #{tpu_custom_call.1} parent=67 // pred_fallthru
          _
        // Predicated region
        $region77: #{tpu_custom_call.1} parent=67 // pred_check
          %p622 = pneg %p235
        $region78: #{tpu_custom_call.1} parent=67 // pred_check_branch
          %624 = sbr.rel (%p622) target = $region80
        $region79: #{tpu_custom_call.1} parent=67 // pred_region
          %s625 = sand.u32 %s30, 1
          %s626 = scalar_lea.sflag [#allocation10], %s625
          %s627 = sand.u32 %s220, 1
          %s628 = smul.addr %s627, 32
          %s629 = scalar_lea.vmem [#allocation11], %s628
          %631 = dma.done %s626, 512
        $region80: #{tpu_custom_call.1} parent=67 // pred_fallthru
          _
      $region68: #{tpu_custom_call.1} parent=5 // pred_fallthru
        _
    $region6: #{tpu_custom_call.1} parent=1 // loop_footer
      %s28 = sadd.s32 1, %s24
    $region7: #{tpu_custom_call.1} parent=1 // loop_footer_branch
      %23 = sbr.rel target = $region3
    $region8: #{tpu_custom_call.1} parent=1 // loop_exit
      _
    %632 = vsyncpa [#allocation3], 1
    %s633 = scalar_lea.sflag [#allocation3], 1
    %634 = vsyncpa %s633, 1
    %635 = vsyncpa [#allocation6], 1
    %636 = vsyncpa [#allocation4], 1
    %s637 = scalar_lea.sflag [#allocation4], 1
    %638 = vsyncpa %s637, 1
    %639 = vsyncpa [#allocation10], 1
    %s640 = scalar_lea.sflag [#allocation10], 1
    %641 = vsyncpa %s640, 1

</llo_original>
